<compile_context>
chip_gen: v7x
topology: tpu7x:2x2x1
jax: 0.10.0
libtpu: 0.0.40
codegen_flags: <defaults>
</compile_context>

<pallas_src>
import jax
import jax.numpy as jnp
from jax.experimental import pallas as pl
from jax.experimental.pallas import tpu as pltpu


def _ta_mha_kernel(q_ref, k_ref, v_ref,
                   wq_ref, wk_ref, wv_ref,
                   bq_ref, bk_ref, bv_ref,
                   hselT_ref, hsel_ref,
                   tk_ref, tv_ref, mq_ref, mk_ref, o_ref):
    f32 = jnp.float32
    cdt = tk_ref.dtype                       # streaming / MXU-operand dtype (bf16 default)

    # Projections for this (batch, T-tile): full-width (E, E) MXU matmuls,
    # bf16 operands, f32 accumulation.
    Q = jnp.dot(q_ref[0], wq_ref[...], preferred_element_type=f32) + bq_ref[...]
    K = jnp.dot(k_ref[0], wk_ref[...], preferred_element_type=f32) + bk_ref[...]
    V = jnp.dot(v_ref[0], wv_ref[...], preferred_element_type=f32) + bv_ref[...]

    t_blk, E = Q.shape
    S = K.shape[0]
    H = hsel_ref.shape[0]
    Dh = E // H

    Qc = Q.astype(cdt)
    Kc = K.astype(cdt)
    Vc = V.astype(cdt)

    # ---- attention logits: sum_{e in head h} Q[t,e] * (K[s,e] + timeK[t,s,e]) ----
    # VPU elementwise in the streaming dtype (no f32 upcast of the time block),
    # then ONE full-width MXU contraction over E against the (E, H) one-hot
    # head selector; result is permuted to the lane-dense (t, H, S) layout for
    # the softmax.
    kt = Kc[None, :, :] + tk_ref[0]                        # (t_blk, S, E)
    qkt = Qc[:, None, :] * kt                              # (t_blk, S, E)
    logits = jnp.dot(qkt.reshape(t_blk * S, E), hselT_ref[...],
                     preferred_element_type=f32)           # (t_blk*S, H) f32
    attn = logits.reshape(t_blk, S, H).transpose(0, 2, 1)  # (t_blk, H, S) f32
    attn = attn * (Dh ** -0.5)

    # Key-padding mask, torch semantics: masked only where BOTH the query and
    # the key position are padding (outer product of the mask with itself).
    prod = mq_ref[0][:, :, None] * mk_ref[0][None, :, :]   # (t_blk, H, S)
    attn = jnp.where(prod != 0.0, f32(-2 ** 32 + 1), attn)

    # Softmax over keys (max-subtracted); the divide goes to the EUP.
    amax = jnp.max(attn, axis=-1, keepdims=True)
    ex = jnp.exp(attn - amax)
    denom = jnp.sum(ex, axis=-1, keepdims=True)
    p = ex * pl.reciprocal(denom, approx=True)             # (t_blk, H, S) f32
    # TODO(synk): dropout on the attention weights omitted (eval / p=0 behaviour).

    # ---- output: sum_s p[t, head(e), s] * (V[s,e] + timeV[t,s,e]) ----
    # ONE full-width MXU matmul against the (H, E) selector broadcasts each
    # head's weights onto its Dh output columns; the rest is VPU elementwise
    # plus an f32-accumulated reduction over the key axis.
    p_tsh = p.transpose(0, 2, 1).reshape(t_blk * S, H).astype(cdt)
    p_cols = jnp.dot(p_tsh, hsel_ref[...],
                     preferred_element_type=f32)           # (t_blk*S, E) f32
    p_cols = p_cols.astype(cdt).reshape(t_blk, S, E)       # (t_blk, S, E)
    vt = Vc[None, :, :] + tv_ref[0]                        # (t_blk, S, E)
    out = jnp.sum(p_cols * vt, axis=1, dtype=f32)          # (t_blk, E) f32
    o_ref[0] = out.astype(o_ref.dtype)


def _round_up(x, m):
    return ((x + m - 1) // m) * m


def _vmem_budget_bytes():
    """Usable VMEM, generation-aware (v5e/v6e: 128 MiB, v7x: 64 MiB per core)."""
    cap = 64 * 1024 * 1024
    try:
        info = pltpu.get_tpu_info()
        cap = int(getattr(info, "vmem_capacity_bytes", cap) or cap)
    except Exception:
        pass
    # >= 25% headroom under the physical limit (16 MiB on v7x, 32 MiB on v5e/v6e).
    return max(cap * 3 // 4, 16 * 1024 * 1024)


def _largest_tile(T, cap):
    """Largest multiple-of-8 divisor of T that is <= cap (T must be a multiple of 8)."""
    d = max(min(cap, T), 8)
    d -= d % 8
    while d > 8 and T % d != 0:
        d -= 8
    return max(d, 8)


def _pick_block_t(T, S, E, H, budget_bytes, itemsize):
    """Largest T-tile whose *total* live VMEM per grid step fits the budget.

    Counts the double-buffered time_K/time_V DMA blocks (with (sublane, 128)
    tile padding of the E-minor dim), the elementwise temporaries, the f32
    (t, H, S) attention intermediates and the lane-padded selector-matmul I/O.
    Never falls back to the full T when the budget does not fit: the floor is
    the 8-row minimum tile.
    """
    E_l = _round_up(E, 128)                   # lane padding of E-minor tiles
    S_s = _round_up(S, 32 // itemsize)        # sublane padding of the S axis
    S_l = _round_up(S, 128)                   # lane padding of S-minor tiles
    per_row = (
        2 * 2 * S_s * E_l * itemsize          # 2x-buffered time_K / time_V DMA blocks
        + 4 * S_s * E_l * itemsize            # kt, qkt, vt, p_cols temporaries
        + 1 * S_s * E_l * 4                   # f32 temp for the key-axis reduction
        + S_s * 128 * (4 + itemsize)          # lane-padded (t*S, H) selector-matmul i/o
        + 4 * 8 * S_l * 4                     # attn / exp / p / mask in (H->8, S) f32
        + 16 * E_l                            # query / output rows
    )
    fixed = (
        2 * 2 * S_s * E_l * itemsize          # 2x-buffered key / value input blocks
        + 3 * E_l * E_l * itemsize            # projection weights
        + 4 * 1024 * 1024                     # biases, masks, selectors, slack
    )
    cap_rows = max((budget_bytes - fixed) // per_row, 8)
    if T % 8 != 0:
        return T                              # tiny / irregular T: one full-dim block
    return _largest_tile(T, cap_rows)


def time_aware_mha(queries, keys, values, time_matrix_K, time_matrix_V,
                   key_padding_mask, params, head_num, *,
                   block_t=None, compute_dtype=jnp.bfloat16):
    # NOTE: the original forward's `attn_mask` argument is dead code upstream
    # (overwritten before use), so it is not taken here.
    B, T, E = queries.shape
    S = keys.shape[1]
    H = head_num
    assert E % H == 0
    Dh = E // H
    assert T == S, "original torch code implicitly assumes tgt_len == src_len"

    cdt = jnp.dtype(compute_dtype)
    budget = int(_vmem_budget_bytes())
    if block_t is None:
        block_t = _pick_block_t(T, S, E, H, budget, cdt.itemsize)
        if B * (T // block_t) < 2 and T % 8 == 0 and T >= 16:
            # v7x has 2 TensorCores: make sure the parallel grid has >= 2 programs.
            block_t = _largest_tile(T, T // 2)
    assert T % block_t == 0
    n_t = T // block_t

    # Secondary streams and MXU operands as bf16 (f32 accumulation in-kernel);
    # the dominant (B, T, S, E) time streams stay in their natural E-last
    # layout (no wrapper transpose pass), just down-cast.
    q = queries.astype(cdt)
    k = keys.astype(cdt)
    v = values.astype(cdt)
    tK = time_matrix_K.astype(cdt)
    tV = time_matrix_V.astype(cdt)
    wq = params["Wq"].astype(cdt)
    wk = params["Wk"].astype(cdt)
    wv = params["Wv"].astype(cdt)
    bq = params["bq"].reshape(1, E).astype(jnp.float32)
    bk = params["bk"].reshape(1, E).astype(jnp.float32)
    bv = params["bv"].reshape(1, E).astype(jnp.float32)

    # One-hot head selector (hsel[h, e] = 1 iff hidden column e belongs to head h),
    # hoisted out of the kernel.
    head_of_col = jnp.arange(E, dtype=jnp.int32) // Dh
    hselT = (head_of_col[:, None] == jnp.arange(H, dtype=jnp.int32)[None, :]).astype(cdt)
    hsel = hselT.T

    # torch builds its (B*H, S) key-padding table with ordering b*H + h but applies
    # it to attention rows ordered h*B + b; reproduce that exactly: head h of batch
    # b uses the mask of original batch (h*B + b) // H.
    kpm_f = key_padding_mask.astype(jnp.float32)                               # (B, S)
    src_batch = (jnp.arange(H)[None, :] * B + jnp.arange(B)[:, None]) // H     # (B, H)
    mask_k = kpm_f[src_batch]                                                  # (B, H, S)
    mask_q = mask_k.transpose(0, 2, 1)                                         # (B, T, H)

    grid_spec = pltpu.PrefetchScalarGridSpec(
        num_scalar_prefetch=0,
        grid=(B, n_t),
        in_specs=[
            pl.BlockSpec((1, block_t, E), lambda b, t: (b, t, 0)),        # queries
            pl.BlockSpec((1, S, E), lambda b, t: (b, 0, 0)),              # keys
            pl.BlockSpec((1, S, E), lambda b, t: (b, 0, 0)),              # values
            pl.BlockSpec((E, E), lambda b, t: (0, 0)),                    # Wq
            pl.BlockSpec((E, E), lambda b, t: (0, 0)),                    # Wk
            pl.BlockSpec((E, E), lambda b, t: (0, 0)),                    # Wv
            pl.BlockSpec((1, E), lambda b, t: (0, 0)),                    # bq
            pl.BlockSpec((1, E), lambda b, t: (0, 0)),                    # bk
            pl.BlockSpec((1, E), lambda b, t: (0, 0)),                    # bv
            pl.BlockSpec((E, H), lambda b, t: (0, 0)),                    # hsel^T
            pl.BlockSpec((H, E), lambda b, t: (0, 0)),                    # hsel
            pl.BlockSpec((1, block_t, S, E), lambda b, t: (b, t, 0, 0)),  # time_K (bf16)
            pl.BlockSpec((1, block_t, S, E), lambda b, t: (b, t, 0, 0)),  # time_V (bf16)
            pl.BlockSpec((1, block_t, H), lambda b, t: (b, t, 0)),        # query-axis mask
            pl.BlockSpec((1, H, S), lambda b, t: (b, 0, 0)),              # key-axis mask
        ],
        out_specs=pl.BlockSpec((1, block_t, E), lambda b, t: (b, t, 0)),  # lane-dense output
    )

    return pl.pallas_call(
        _ta_mha_kernel,
        out_shape=jax.ShapeDtypeStruct((B, T, E), jnp.float32),
        grid_spec=grid_spec,
        compiler_params=pltpu.CompilerParams(
            dimension_semantics=("parallel", "parallel"),   # shard across v7x's 2 TCs
            vmem_limit_bytes=budget,                        # generation-aware limit
        ),
    )(q, k, v, wq, wk, wv, bq, bk, bv, hselT, hsel, tK, tV, mask_q, mask_k)


def reference(queries, keys, values, tK, tV, kpm, params, H):
    """Pure-JAX f32 transcription of the PyTorch forward (eval mode)."""
    B, T, E = queries.shape
    S = keys.shape[1]
    Dh = E // H
    Q = queries @ params["Wq"] + params["bq"]
    K = keys @ params["Wk"] + params["bk"]
    V = values @ params["Wv"] + params["bv"]
    Q_ = jnp.concatenate(jnp.split(Q, H, axis=2), axis=0)
    K_ = jnp.concatenate(jnp.split(K, H, axis=2), axis=0)
    V_ = jnp.concatenate(jnp.split(V, H, axis=2), axis=0)
    tK_ = jnp.concatenate(jnp.split(tK, H, axis=3), axis=0)
    tV_ = jnp.concatenate(jnp.split(tV, H, axis=3), axis=0)
    attn = jnp.einsum('btd,bsd->bts', Q_, K_)
    attn = attn + jnp.einsum('btsd,btd->bts', tK_, Q_)
    attn = attn / Dh ** 0.5
    kpm_ = jnp.broadcast_to(kpm[:, None, :], (B, H, S)).reshape(B * H, S).astype(jnp.float32)
    mask = (kpm_[:, :, None] * kpm_[:, None, :]).astype(jnp.int32).astype(bool)
    attn = jnp.where(mask, jnp.float32(-2 ** 32 + 1), attn)
    attn = jax.nn.softmax(attn, axis=-1)
    out = jnp.einsum('bts,bsd->btd', attn, V_)
    out = out + jnp.einsum('bts,btsd->btd', attn, tV_)
    return jnp.concatenate(jnp.split(out, H, axis=0), axis=2)


if __name__ == "__main__":
    B, S, E, H = 2, 8, 32, 4   # batch, seq (tgt == src), hidden, heads
    T = S

    kp = jax.random.split(jax.random.PRNGKey(0), 11)
    params = {
        "Wq": jax.random.normal(kp[0], (E, E), jnp.float32) * 0.05,
        "Wk": jax.random.normal(kp[1], (E, E), jnp.float32) * 0.05,
        "Wv": jax.random.normal(kp[2], (E, E), jnp.float32) * 0.05,
        "bq": jax.random.normal(kp[3], (E,), jnp.float32) * 0.01,
        "bk": jax.random.normal(kp[4], (E,), jnp.float32) * 0.01,
        "bv": jax.random.normal(kp[5], (E,), jnp.float32) * 0.01,
    }
    queries = jax.random.normal(kp[6], (B, T, E), jnp.float32)
    keys = jax.random.normal(kp[7], (B, S, E), jnp.float32)
    values = jax.random.normal(kp[8], (B, S, E), jnp.float32)
    time_matrix_K = jax.random.normal(kp[9], (B, T, S, E), jnp.float32) * 0.1
    time_matrix_V = jax.random.normal(kp[10], (B, T, S, E), jnp.float32) * 0.1
    # key_padding_mask: True where the position is padding, lengths [6, 8].
    lengths = jnp.array([6, 8])
    key_padding_mask = jnp.arange(S)[None, :] >= lengths[:, None]

    out = time_aware_mha(queries, keys, values, time_matrix_K, time_matrix_V,
                         key_padding_mask, params, H)
    out = jax.block_until_ready(out)
    assert out.shape == (B, T, E)
    assert bool(jnp.all(jnp.isfinite(out)))

    # Parity vs. the full-f32 torch semantics.  The kernel streams and multiplies
    # in bf16 with f32 accumulation, so allow bf16-level tolerance.
    ref = reference(queries, keys, values, time_matrix_K, time_matrix_V,
                    key_padding_mask, params, H)
    assert jnp.allclose(out, ref, atol=3e-2, rtol=3e-2), \
        float(jnp.max(jnp.abs(out - ref)))

    print("KERNEL_OK")
</pallas_src>

<mosaic_0001>
module attributes {stable_mosaic.version = 11 : i64} {
  func.func @_ta_mha_kernel(%arg0: i32, %arg1: i32, %arg2: memref<1x8x32xbf16, #tpu.memory_space<vmem>>, %arg3: memref<1x8x32xbf16, #tpu.memory_space<vmem>>, %arg4: memref<1x8x32xbf16, #tpu.memory_space<vmem>>, %arg5: memref<32x32xbf16, #tpu.memory_space<vmem>>, %arg6: memref<32x32xbf16, #tpu.memory_space<vmem>>, %arg7: memref<32x32xbf16, #tpu.memory_space<vmem>>, %arg8: memref<1x32xf32, #tpu.memory_space<vmem>>, %arg9: memref<1x32xf32, #tpu.memory_space<vmem>>, %arg10: memref<1x32xf32, #tpu.memory_space<vmem>>, %arg11: memref<32x4xbf16, #tpu.memory_space<vmem>>, %arg12: memref<4x32xbf16, #tpu.memory_space<vmem>>, %arg13: memref<1x8x8x32xbf16, #tpu.memory_space<vmem>>, %arg14: memref<1x8x8x32xbf16, #tpu.memory_space<vmem>>, %arg15: memref<1x8x4xf32, #tpu.memory_space<vmem>>, %arg16: memref<1x4x8xf32, #tpu.memory_space<vmem>>, %arg17: memref<1x8x32xf32, #tpu.memory_space<vmem>>) attributes {dimension_semantics = [#tpu.dimension_semantics<parallel>, #tpu.dimension_semantics<parallel>], iteration_bounds = array<i64: 2, 1>, scalar_prefetch = 0 : i64, scratch_operands = 0 : i64, tpu.core_type = #tpu.core_type<tc>, window_params = [{transform_indices = @transform_0, window_bounds = array<i64: 1, 8, 32>}, {transform_indices = @transform_1, window_bounds = array<i64: 1, 8, 32>}, {transform_indices = @transform_2, window_bounds = array<i64: 1, 8, 32>}, {pipeline_mode = #tpu.pipeline_mode<synchronous>, transform_indices = @transform_3, window_bounds = array<i64: 32, 32>}, {pipeline_mode = #tpu.pipeline_mode<synchronous>, transform_indices = @transform_4, window_bounds = array<i64: 32, 32>}, {pipeline_mode = #tpu.pipeline_mode<synchronous>, transform_indices = @transform_5, window_bounds = array<i64: 32, 32>}, {pipeline_mode = #tpu.pipeline_mode<synchronous>, transform_indices = @transform_6, window_bounds = array<i64: 1, 32>}, {pipeline_mode = #tpu.pipeline_mode<synchronous>, transform_indices = @transform_7, window_bounds = array<i64: 1, 32>}, {pipeline_mode = #tpu.pipeline_mode<synchronous>, transform_indices = @transform_8, window_bounds = array<i64: 1, 32>}, {pipeline_mode = #tpu.pipeline_mode<synchronous>, transform_indices = @transform_9, window_bounds = array<i64: 32, 4>}, {pipeline_mode = #tpu.pipeline_mode<synchronous>, transform_indices = @transform_10, window_bounds = array<i64: 4, 32>}, {transform_indices = @transform_11, window_bounds = array<i64: 1, 8, 8, 32>}, {transform_indices = @transform_12, window_bounds = array<i64: 1, 8, 8, 32>}, {transform_indices = @transform_13, window_bounds = array<i64: 1, 8, 4>}, {transform_indices = @transform_14, window_bounds = array<i64: 1, 4, 8>}, {transform_indices = @transform_15, window_bounds = array<i64: 1, 8, 32>}]} {
    %c0 = arith.constant 0 : index
    %c0_0 = arith.constant 0 : index
    %c0_1 = arith.constant 0 : index
    %0 = vector.load %arg2[%c0, %c0_0, %c0_1] : memref<1x8x32xbf16, #tpu.memory_space<vmem>>, vector<1x8x32xbf16>
    %1 = vector.shape_cast %0 : vector<1x8x32xbf16> to vector<8x32xbf16>
    %c0_2 = arith.constant 0 : index
    %c0_3 = arith.constant 0 : index
    %2 = vector.load %arg5[%c0_2, %c0_3] : memref<32x32xbf16, #tpu.memory_space<vmem>>, vector<32x32xbf16>
    %cst = arith.constant dense<0.000000e+00> : vector<8x32xf32>
    %3 = tpu.matmul %1, %2, %cst {dimension_numbers = #tpu.dot_dimension_numbers<[1], [0], [0], [1], [0, 0, 1, 1], [], []>} : vector<8x32xbf16>, vector<32x32xbf16>, vector<8x32xf32> -> vector<8x32xf32>
    %c0_4 = arith.constant 0 : index
    %c0_5 = arith.constant 0 : index
    %4 = vector.load %arg8[%c0_4, %c0_5] : memref<1x32xf32, #tpu.memory_space<vmem>>, vector<1x32xf32>
    %5 = vector.broadcast %4 : vector<1x32xf32> to vector<8x32xf32>
    %6 = arith.addf %3, %5 : vector<8x32xf32>
    %c0_6 = arith.constant 0 : index
    %c0_7 = arith.constant 0 : index
    %c0_8 = arith.constant 0 : index
    %7 = vector.load %arg3[%c0_6, %c0_7, %c0_8] : memref<1x8x32xbf16, #tpu.memory_space<vmem>>, vector<1x8x32xbf16>
    %8 = vector.shape_cast %7 : vector<1x8x32xbf16> to vector<8x32xbf16>
    %c0_9 = arith.constant 0 : index
    %c0_10 = arith.constant 0 : index
    %9 = vector.load %arg6[%c0_9, %c0_10] : memref<32x32xbf16, #tpu.memory_space<vmem>>, vector<32x32xbf16>
    %cst_11 = arith.constant dense<0.000000e+00> : vector<8x32xf32>
    %10 = tpu.matmul %8, %9, %cst_11 {dimension_numbers = #tpu.dot_dimension_numbers<[1], [0], [0], [1], [0, 0, 1, 1], [], []>} : vector<8x32xbf16>, vector<32x32xbf16>, vector<8x32xf32> -> vector<8x32xf32>
    %c0_12 = arith.constant 0 : index
    %c0_13 = arith.constant 0 : index
    %11 = vector.load %arg9[%c0_12, %c0_13] : memref<1x32xf32, #tpu.memory_space<vmem>>, vector<1x32xf32>
    %12 = vector.broadcast %11 : vector<1x32xf32> to vector<8x32xf32>
    %13 = arith.addf %10, %12 : vector<8x32xf32>
    %c0_14 = arith.constant 0 : index
    %c0_15 = arith.constant 0 : index
    %c0_16 = arith.constant 0 : index
    %14 = vector.load %arg4[%c0_14, %c0_15, %c0_16] : memref<1x8x32xbf16, #tpu.memory_space<vmem>>, vector<1x8x32xbf16>
    %15 = vector.shape_cast %14 : vector<1x8x32xbf16> to vector<8x32xbf16>
    %c0_17 = arith.constant 0 : index
    %c0_18 = arith.constant 0 : index
    %16 = vector.load %arg7[%c0_17, %c0_18] : memref<32x32xbf16, #tpu.memory_space<vmem>>, vector<32x32xbf16>
    %cst_19 = arith.constant dense<0.000000e+00> : vector<8x32xf32>
    %17 = tpu.matmul %15, %16, %cst_19 {dimension_numbers = #tpu.dot_dimension_numbers<[1], [0], [0], [1], [0, 0, 1, 1], [], []>} : vector<8x32xbf16>, vector<32x32xbf16>, vector<8x32xf32> -> vector<8x32xf32>
    %c0_20 = arith.constant 0 : index
    %c0_21 = arith.constant 0 : index
    %18 = vector.load %arg10[%c0_20, %c0_21] : memref<1x32xf32, #tpu.memory_space<vmem>>, vector<1x32xf32>
    %19 = vector.broadcast %18 : vector<1x32xf32> to vector<8x32xf32>
    %20 = arith.addf %17, %19 : vector<8x32xf32>
    %21 = arith.truncf %6 : vector<8x32xf32> to vector<8x32xbf16>
    %22 = arith.truncf %13 : vector<8x32xf32> to vector<8x32xbf16>
    %23 = arith.truncf %20 : vector<8x32xf32> to vector<8x32xbf16>
    %24 = vector.shape_cast %22 : vector<8x32xbf16> to vector<1x8x32xbf16>
    %c0_22 = arith.constant 0 : index
    %c0_23 = arith.constant 0 : index
    %c0_24 = arith.constant 0 : index
    %c0_25 = arith.constant 0 : index
    %25 = vector.load %arg13[%c0_22, %c0_23, %c0_24, %c0_25] : memref<1x8x8x32xbf16, #tpu.memory_space<vmem>>, vector<1x8x8x32xbf16>
    %26 = vector.shape_cast %25 : vector<1x8x8x32xbf16> to vector<8x8x32xbf16>
    %27 = vector.broadcast %24 : vector<1x8x32xbf16> to vector<8x8x32xbf16>
    %28 = arith.addf %27, %26 : vector<8x8x32xbf16>
    %29 = vector.shape_cast %21 : vector<8x32xbf16> to vector<8x1x32xbf16>
    %30 = vector.broadcast %29 : vector<8x1x32xbf16> to vector<8x8x32xbf16>
    %31 = arith.mulf %30, %28 : vector<8x8x32xbf16>
    %32 = vector.shape_cast %31 : vector<8x8x32xbf16> to vector<64x32xbf16>
    %c0_26 = arith.constant 0 : index
    %c0_27 = arith.constant 0 : index
    %33 = vector.load %arg11[%c0_26, %c0_27] : memref<32x4xbf16, #tpu.memory_space<vmem>>, vector<32x4xbf16>
    %cst_28 = arith.constant dense<0.000000e+00> : vector<64x4xf32>
    %34 = tpu.matmul %32, %33, %cst_28 {dimension_numbers = #tpu.dot_dimension_numbers<[1], [0], [0], [1], [0, 0, 1, 1], [], []>} : vector<64x32xbf16>, vector<32x4xbf16>, vector<64x4xf32> -> vector<64x4xf32>
    %35 = vector.shape_cast %34 : vector<64x4xf32> to vector<8x8x4xf32>
    %36 = tpu.transpose %35, [0, 2, 1] : vector<8x8x4xf32> -> vector<8x4x8xf32>
    %cst_29 = arith.constant 0.353553385 : f32
    %37 = vector.broadcast %cst_29 : f32 to vector<8x4x8xf32>
    %38 = arith.mulf %36, %37 : vector<8x4x8xf32>
    %c0_30 = arith.constant 0 : index
    %c0_31 = arith.constant 0 : index
    %c0_32 = arith.constant 0 : index
    %39 = vector.load %arg15[%c0_30, %c0_31, %c0_32] : memref<1x8x4xf32, #tpu.memory_space<vmem>>, vector<1x8x4xf32>
    %40 = vector.shape_cast %39 : vector<1x8x4xf32> to vector<8x4xf32>
    %41 = vector.shape_cast %40 : vector<8x4xf32> to vector<8x4x1xf32>
    %c0_33 = arith.constant 0 : index
    %c0_34 = arith.constant 0 : index
    %c0_35 = arith.constant 0 : index
    %42 = vector.load %arg16[%c0_33, %c0_34, %c0_35] : memref<1x4x8xf32, #tpu.memory_space<vmem>>, vector<1x4x8xf32>
    %43 = vector.shape_cast %42 : vector<1x4x8xf32> to vector<4x8xf32>
    %44 = vector.shape_cast %43 : vector<4x8xf32> to vector<1x4x8xf32>
    %45 = vector.broadcast %41 : vector<8x4x1xf32> to vector<8x4x8xf32>
    %46 = vector.broadcast %44 : vector<1x4x8xf32> to vector<8x4x8xf32>
    %47 = arith.mulf %45, %46 : vector<8x4x8xf32>
    %cst_36 = arith.constant 0.000000e+00 : f32
    %48 = vector.broadcast %cst_36 : f32 to vector<8x4x8xf32>
    %49 = arith.cmpf one, %47, %48 : vector<8x4x8xf32>
    %cst_37 = arith.constant -4.2949673E+9 : f32
    %50 = vector.broadcast %cst_37 : f32 to vector<8x4x8xf32>
    %51 = arith.select %49, %50, %38 : vector<8x4x8xi1>, vector<8x4x8xf32>
    %cst_38 = arith.constant dense<0xFF800000> : vector<8x4xf32>
    %52 = vector.multi_reduction <maximumf>, %51, %cst_38 [2] : vector<8x4x8xf32> to vector<8x4xf32>
    %53 = vector.shape_cast %52 : vector<8x4xf32> to vector<8x4x1xf32>
    %54 = vector.broadcast %53 : vector<8x4x1xf32> to vector<8x4x8xf32>
    %55 = arith.subf %51, %54 : vector<8x4x8xf32>
    %56 = math.exp %55 : vector<8x4x8xf32>
    %cst_39 = arith.constant dense<0.000000e+00> : vector<8x4xf32>
    %57 = vector.multi_reduction <add>, %56, %cst_39 [2] : vector<8x4x8xf32> to vector<8x4xf32>
    %58 = vector.shape_cast %57 : vector<8x4xf32> to vector<8x4x1xf32>
    %59 = tpu.reciprocal %58 {approx = true} : vector<8x4x1xf32> -> vector<8x4x1xf32>
    %60 = vector.broadcast %59 : vector<8x4x1xf32> to vector<8x4x8xf32>
    %61 = arith.mulf %56, %60 : vector<8x4x8xf32>
    %62 = tpu.transpose %61, [0, 2, 1] : vector<8x4x8xf32> -> vector<8x8x4xf32>
    %63 = vector.shape_cast %62 : vector<8x8x4xf32> to vector<64x4xf32>
    %64 = arith.truncf %63 : vector<64x4xf32> to vector<64x4xbf16>
    %c0_40 = arith.constant 0 : index
    %c0_41 = arith.constant 0 : index
    %65 = vector.load %arg12[%c0_40, %c0_41] : memref<4x32xbf16, #tpu.memory_space<vmem>>, vector<4x32xbf16>
    %cst_42 = arith.constant dense<0.000000e+00> : vector<64x32xf32>
    %66 = tpu.matmul %64, %65, %cst_42 {dimension_numbers = #tpu.dot_dimension_numbers<[1], [0], [0], [1], [0, 0, 1, 1], [], []>} : vector<64x4xbf16>, vector<4x32xbf16>, vector<64x32xf32> -> vector<64x32xf32>
    %67 = arith.truncf %66 : vector<64x32xf32> to vector<64x32xbf16>
    %68 = vector.shape_cast %67 : vector<64x32xbf16> to vector<8x8x32xbf16>
    %69 = vector.shape_cast %23 : vector<8x32xbf16> to vector<1x8x32xbf16>
    %c0_43 = arith.constant 0 : index
    %c0_44 = arith.constant 0 : index
    %c0_45 = arith.constant 0 : index
    %c0_46 = arith.constant 0 : index
    %70 = vector.load %arg14[%c0_43, %c0_44, %c0_45, %c0_46] : memref<1x8x8x32xbf16, #tpu.memory_space<vmem>>, vector<1x8x8x32xbf16>
    %71 = vector.shape_cast %70 : vector<1x8x8x32xbf16> to vector<8x8x32xbf16>
    %72 = vector.broadcast %69 : vector<1x8x32xbf16> to vector<8x8x32xbf16>
    %73 = arith.addf %72, %71 : vector<8x8x32xbf16>
    %74 = arith.mulf %68, %73 : vector<8x8x32xbf16>
    %75 = arith.extf %74 : vector<8x8x32xbf16> to vector<8x8x32xf32>
    %cst_47 = arith.constant dense<0.000000e+00> : vector<8x32xf32>
    %76 = vector.multi_reduction <add>, %75, %cst_47 [1] : vector<8x8x32xf32> to vector<8x32xf32>
    %c0_48 = arith.constant 0 : index
    %c0_49 = arith.constant 0 : index
    %c0_50 = arith.constant 0 : index
    %77 = vector.load %arg17[%c0_48, %c0_49, %c0_50] : memref<1x8x32xf32, #tpu.memory_space<vmem>>, vector<1x8x32xf32>
    %78 = vector.shape_cast %77 : vector<1x8x32xf32> to vector<8x32xf32>
    %79 = vector.shape_cast %76 : vector<8x32xf32> to vector<1x8x32xf32>
    tpu.vector_store %arg17[%c0_48, %c0_49, %c0_50], %79 {strides = array<i32>} : memref<1x8x32xf32, #tpu.memory_space<vmem>>, vector<1x8x32xf32>,
    return
  }
  func.func @transform_0(%arg0: i32, %arg1: i32) -> (i32, i32, i32) {
    %c0_i32 = arith.constant 0 : i32
    %c0_i32_0 = arith.constant 0 : i32
    return %arg0, %arg1, %c0_i32 : i32, i32, i32
  }
  func.func @transform_1(%arg0: i32, %arg1: i32) -> (i32, i32, i32) {
    %c0_i32 = arith.constant 0 : i32
    %c0_i32_0 = arith.constant 0 : i32
    %c0_i32_1 = arith.constant 0 : i32
    return %arg0, %c0_i32, %c0_i32_0 : i32, i32, i32
  }
  func.func @transform_2(%arg0: i32, %arg1: i32) -> (i32, i32, i32) {
    %c0_i32 = arith.constant 0 : i32
    %c0_i32_0 = arith.constant 0 : i32
    %c0_i32_1 = arith.constant 0 : i32
    return %arg0, %c0_i32, %c0_i32_0 : i32, i32, i32
  }
  func.func @transform_3(%arg0: i32, %arg1: i32) -> (i32, i32) {
    %c0_i32 = arith.constant 0 : i32
    %c0_i32_0 = arith.constant 0 : i32
    %c0_i32_1 = arith.constant 0 : i32
    return %c0_i32, %c0_i32_0 : i32, i32
  }
  func.func @transform_4(%arg0: i32, %arg1: i32) -> (i32, i32) {
    %c0_i32 = arith.constant 0 : i32
    %c0_i32_0 = arith.constant 0 : i32
    %c0_i32_1 = arith.constant 0 : i32
    return %c0_i32, %c0_i32_0 : i32, i32
  }
  func.func @transform_5(%arg0: i32, %arg1: i32) -> (i32, i32) {
    %c0_i32 = arith.constant 0 : i32
    %c0_i32_0 = arith.constant 0 : i32
    %c0_i32_1 = arith.constant 0 : i32
    return %c0_i32, %c0_i32_0 : i32, i32
  }
  func.func @transform_6(%arg0: i32, %arg1: i32) -> (i32, i32) {
    %c0_i32 = arith.constant 0 : i32
    %c0_i32_0 = arith.constant 0 : i32
    %c0_i32_1 = arith.constant 0 : i32
    return %c0_i32, %c0_i32_0 : i32, i32
  }
  func.func @transform_7(%arg0: i32, %arg1: i32) -> (i32, i32) {
    %c0_i32 = arith.constant 0 : i32
    %c0_i32_0 = arith.constant 0 : i32
    %c0_i32_1 = arith.constant 0 : i32
    return %c0_i32, %c0_i32_0 : i32, i32
  }
  func.func @transform_8(%arg0: i32, %arg1: i32) -> (i32, i32) {
    %c0_i32 = arith.constant 0 : i32
    %c0_i32_0 = arith.constant 0 : i32
    %c0_i32_1 = arith.constant 0 : i32
    return %c0_i32, %c0_i32_0 : i32, i32
  }
  func.func @transform_9(%arg0: i32, %arg1: i32) -> (i32, i32) {
    %c0_i32 = arith.constant 0 : i32
    %c0_i32_0 = arith.constant 0 : i32
    %c0_i32_1 = arith.constant 0 : i32
    return %c0_i32, %c0_i32_0 : i32, i32
  }
  func.func @transform_10(%arg0: i32, %arg1: i32) -> (i32, i32) {
    %c0_i32 = arith.constant 0 : i32
    %c0_i32_0 = arith.constant 0 : i32
    %c0_i32_1 = arith.constant 0 : i32
    return %c0_i32, %c0_i32_0 : i32, i32
  }
  func.func @transform_11(%arg0: i32, %arg1: i32) -> (i32, i32, i32, i32) {
    %c0_i32 = arith.constant 0 : i32
    %c0_i32_0 = arith.constant 0 : i32
    %c0_i32_1 = arith.constant 0 : i32
    return %arg0, %arg1, %c0_i32, %c0_i32_0 : i32, i32, i32, i32
  }
  func.func @transform_12(%arg0: i32, %arg1: i32) -> (i32, i32, i32, i32) {
    %c0_i32 = arith.constant 0 : i32
    %c0_i32_0 = arith.constant 0 : i32
    %c0_i32_1 = arith.constant 0 : i32
    return %arg0, %arg1, %c0_i32, %c0_i32_0 : i32, i32, i32, i32
  }
  func.func @transform_13(%arg0: i32, %arg1: i32) -> (i32, i32, i32) {
    %c0_i32 = arith.constant 0 : i32
    %c0_i32_0 = arith.constant 0 : i32
    return %arg0, %arg1, %c0_i32 : i32, i32, i32
  }
  func.func @transform_14(%arg0: i32, %arg1: i32) -> (i32, i32, i32) {
    %c0_i32 = arith.constant 0 : i32
    %c0_i32_0 = arith.constant 0 : i32
    %c0_i32_1 = arith.constant 0 : i32
    return %arg0, %c0_i32, %c0_i32_0 : i32, i32, i32
  }
  func.func @transform_15(%arg0: i32, %arg1: i32) -> (i32, i32, i32) {
    %c0_i32 = arith.constant 0 : i32
    %c0_i32_0 = arith.constant 0 : i32
    return %arg0, %arg1, %c0_i32 : i32, i32, i32
  }
}

</mosaic_0001>

<llo_original>
// kernel: tpu_custom_call.1
$region0: #{tpu_custom_call.1}
  #allocation0 [shape = 'u32[]', space=smem, size = 0x4, offset = 0x4, fixed_abs, tag = 'smem constant byte address 0x4 - core index']
  #allocation1 [shape = 'u32[144,128]{1,0:T(1,128)}', space=vmem, size = 0x12000, scoped, tag = 'internal scratch']
  %s0 = inlined_call_operand.hbm [shape: bf16[2,8,32], index: 0, kind: input, shape index: {}]
  %s1 = inlined_call_operand.hbm [shape: bf16[2,8,32], index: 1, kind: input, shape index: {}]
  %s2 = inlined_call_operand.hbm [shape: bf16[2,8,32], index: 2, kind: input, shape index: {}]
  %s3 = inlined_call_operand.vmem [shape: bf16[32,32], index: 3, kind: input, shape index: {}]
  %s4 = inlined_call_operand.hbm [shape: bf16[32,32], index: 4, kind: input, shape index: {}]
  %s5 = inlined_call_operand.hbm [shape: bf16[32,32], index: 5, kind: input, shape index: {}]
  %s6 = inlined_call_operand.vmem [shape: f32[1,32], index: 6, kind: input, shape index: {}]
  %s7 = inlined_call_operand.hbm [shape: f32[1,32], index: 7, kind: input, shape index: {}]
  %s8 = inlined_call_operand.hbm [shape: f32[1,32], index: 8, kind: input, shape index: {}]
  %s9 = inlined_call_operand.vmem [shape: bf16[32,4], index: 9, kind: input, shape index: {}]
  %s10 = inlined_call_operand.vmem [shape: bf16[4,32], index: 10, kind: input, shape index: {}]
  %s11 = inlined_call_operand.vmem [shape: bf16[2,8,8,32], index: 11, kind: input, shape index: {}]
  %s12 = inlined_call_operand.hbm [shape: bf16[2,8,8,32], index: 12, kind: input, shape index: {}]
  %s13 = inlined_call_operand.vmem [shape: f32[2,8,4], index: 13, kind: input, shape index: {}]
  %s14 = inlined_call_operand.hbm [shape: f32[2,4,8], index: 14, kind: input, shape index: {}]
  %s15 = inlined_call_operand.hbm [shape: f32[2,8,32], index: 15, kind: output, shape index: {}]
  %s16 = sld [smem:[#allocation0]]
  $region129: #{tpu_custom_call.1} parent=0
    _
  %s18 = ssub.s32 1, %s16
  %s19 = scalar_select 0, %s18, %s16
  $region1: #{tpu_custom_call.1} parent=0
    #allocation2 [shape = 'u8[4096]{0}', space=vmem, size = 0x1000, scoped, tag = 'input window, operand 0']
    #allocation3 [shape = 's32[2]{0}', space=sflag, size = 0x8, scoped, tag = 'scoped memory for tpu_custom_call.1']
    #allocation4 [shape = 's32[2]{0}', space=sflag, size = 0x8, scoped, tag = 'scoped memory for tpu_custom_call.1']
    #allocation5 [shape = 'u8[4096]{0}', space=vmem, size = 0x1000, scoped, tag = 'input window, operand 1']
    #allocation6 [shape = 's32[2]{0}', space=sflag, size = 0x8, scoped, tag = 'scoped memory for tpu_custom_call.1']
    #allocation7 [shape = 'u8[4096]{0}', space=vmem, size = 0x1000, scoped, tag = 'input window, operand 2']
    #allocation8 [shape = 'u8[8192]{0}', space=vmem, size = 0x2000, scoped, tag = 'input window, operand 4, single buffered']
    #allocation9 [shape = 's32[1]{0}', space=sflag, size = 0x4, scoped, tag = 'scoped memory for tpu_custom_call.1']
    #allocation10 [shape = 'u8[8192]{0}', space=vmem, size = 0x2000, scoped, tag = 'input window, operand 5, single buffered']
    #allocation11 [shape = 'u8[512]{0}', space=vmem, size = 0x400, scoped, tag = 'input window, operand 7, single buffered']
    #allocation12 [shape = 's32[1]{0}', space=sflag, size = 0x4, scoped, tag = 'scoped memory for tpu_custom_call.1']
    #allocation13 [shape = 'u8[512]{0}', space=vmem, size = 0x400, scoped, tag = 'input window, operand 8, single buffered']
    #allocation14 [shape = 'u8[32768]{0}', space=vmem, size = 0x8000, scoped, tag = 'input window, operand 12']
    #allocation15 [shape = 's32[2]{0}', space=sflag, size = 0x8, scoped, tag = 'scoped memory for tpu_custom_call.1']
    #allocation16 [shape = 'u8[4096]{0}', space=vmem, size = 0x1000, scoped, tag = 'input window, operand 14']
    #allocation17 [shape = 'u8[8192]{0}', space=vmem, size = 0x2000, scoped, tag = 'output window, operand 0']
    %20 = vsyncpa [#allocation3], 0
    %s21 = scalar_lea.sflag [#allocation3], 1
    %22 = vsyncpa %s21, 0
    %23 = vsyncpa [#allocation6], 0
    %s24 = scalar_lea.sflag [#allocation6], 1
    %25 = vsyncpa %s24, 0
    %26 = vsyncpa [#allocation9], 0
    %27 = vsyncpa [#allocation12], 0
    %28 = vsyncpa [#allocation15], 0
    %s29 = scalar_lea.sflag [#allocation15], 1
    %30 = vsyncpa %s29, 0
    %31 = vsyncpa [#allocation4], 0
    %s32 = scalar_lea.sflag [#allocation4], 1
    %33 = vsyncpa %s32, 0
    loop: start=0, step=1, limit=4
    $region2: #{tpu_custom_call.1} parent=1 // loop_pre_header
      _
    $region3: #{tpu_custom_call.1} parent=1 // loop_header
      %s35 = sphi 0, %s39
      %p36 = scmp.ge.s32.totalorder %s35, 4
      %s42 = sphi 0, %s54
      %s43 = sphi 0, %s50
      %s44 = sphi 0, %s42
      %s45 = sphi 0, %s43
      %s46 = sphi 0, %s44
      %s47 = sphi 0, %s45
      %s59 = sphi 0, %s61
      %s62 = sphi 0, %s59
      %s63 = sphi 0, %s62
      %s79 = sphi 0, %s63
      %s85 = sphi 0, %s87
      %s88 = sphi 0, %s85
      %s89 = sphi 0, %s88
      %s105 = sphi 0, %s89
      %s111 = sphi 0, %s113
      %s114 = sphi 0, %s111
      %s115 = sphi 0, %s114
      %s131 = sphi 0, %s115
      %s135 = sphi 0, %s135
      %s137 = sphi 0, %s135
      %s138 = sphi 0, %s137
      %s152 = sphi 0, %s138
      %s156 = sphi 0, %s156
      %s158 = sphi 0, %s156
      %s159 = sphi 0, %s158
      %s173 = sphi 0, %s159
      %s177 = sphi 0, %s177
      %s179 = sphi 0, %s177
      %s180 = sphi 0, %s179
      %s194 = sphi 0, %s180
      %s198 = sphi 0, %s198
      %s200 = sphi 0, %s198
      %s201 = sphi 0, %s200
      %s215 = sphi 0, %s201
      %s219 = sphi 0, %s219
      %s221 = sphi 0, %s219
      %s222 = sphi 0, %s221
      %s236 = sphi 0, %s222
      %s240 = sphi 0, %s240
      %s242 = sphi 0, %s240
      %s243 = sphi 0, %s242
      %s257 = sphi 0, %s243
      %s261 = sphi 0, %s261
      %s263 = sphi 0, %s261
      %s264 = sphi 0, %s263
      %s278 = sphi 0, %s264
      %s282 = sphi 0, %s282
      %s284 = sphi 0, %s282
      %s285 = sphi 0, %s284
      %s299 = sphi 0, %s285
      %s307 = sphi 0, %s309
      %s310 = sphi 0, %s307
      %s311 = sphi 0, %s310
      %s327 = sphi 0, %s311
      %s335 = sphi 0, %s337
      %s338 = sphi 0, %s335
      %s339 = sphi 0, %s338
      %s355 = sphi 0, %s339
      %s363 = sphi 0, %s365
      %s366 = sphi 0, %s363
      %s367 = sphi 0, %s366
      %s383 = sphi 0, %s367
      %s389 = sphi 0, %s391
      %s392 = sphi 0, %s389
      %s393 = sphi 0, %s392
      %s409 = sphi 0, %s393
      %s417 = sphi 0, %s419
      %s420 = sphi 0, %s417
      %s421 = sphi 0, %s420
      %s437 = sphi 0, %s421
    $region4: #{tpu_custom_call.1} parent=1 // loop_header_branch
      %38 = sbr.rel (%p36) target = $region8
    $region5: #{tpu_custom_call.1} parent=1 // loop_body
      %s40 = ssub.s32 %s35, 1
      %s41 = ssub.s32 %s35, 2
      %s48 = sadd.s32 1, %s43
      %p49 = scmp.ge.s32.totalorder %s48, 1
      %s50 = scalar_select %p49, 0, %s48
      %s51 = sadd.s32 1, %s42
      %s52 = scalar_select %p49, %s51, %s42
      %p53 = scmp.ge.s32.totalorder %s52, 2
      %s54 = scalar_select %p53, 0, %s52
      %s55 = ssub.s32 %s42, %s54
      %s56 = ssub.s32 %s43, %s50
      %s57 = sor.u32 %s55, %s56
      %p58 = scmp.eq.s32.totalorder %s57, 0
      %s60 = sadd.s32 %s59, 1
      %s61 = scalar_select %p58, %s59, %s60
      %p64 = pneg %p58
      %p65 = scmp.eq.s32.totalorder %s35, 1
      %p66 = por %p64, %p65
      %p67 = scmp.ne.s32.totalorder %s59, %s62
      %p68 = scmp.eq.s32.totalorder %s35, 0
      %p69 = por %p67, %p68
      %p70 = scmp.ne.s32.totalorder %s59, %s62
      %p71 = scmp.eq.s32.totalorder %s40, 1
      %p72 = por %p70, %p71
      %p73 = scmp.ne.s32.totalorder %s62, %s63
      %p74 = scmp.eq.s32.totalorder %s40, 0
      %p75 = por %p73, %p74
      %p76 = scmp.ne.s32.totalorder %s62, %s63
      %p77 = scmp.eq.s32.totalorder %s41, 1
      %p78 = por %p76, %p77
      %p80 = scmp.ne.s32.totalorder %s63, %s79
      %p81 = scmp.eq.s32.totalorder %s41, 0
      %p82 = por %p80, %p81
      %s83 = ssub.s32 %s42, %s54
      %p84 = scmp.eq.s32.totalorder %s83, 0
      %s86 = sadd.s32 %s85, 1
      %s87 = scalar_select %p84, %s85, %s86
      %p90 = pneg %p84
      %p91 = scmp.eq.s32.totalorder %s35, 1
      %p92 = por %p90, %p91
      %p93 = scmp.ne.s32.totalorder %s85, %s88
      %p94 = scmp.eq.s32.totalorder %s35, 0
      %p95 = por %p93, %p94
      %p96 = scmp.ne.s32.totalorder %s85, %s88
      %p97 = scmp.eq.s32.totalorder %s40, 1
      %p98 = por %p96, %p97
      %p99 = scmp.ne.s32.totalorder %s88, %s89
      %p100 = scmp.eq.s32.totalorder %s40, 0
      %p101 = por %p99, %p100
      %p102 = scmp.ne.s32.totalorder %s88, %s89
      %p103 = scmp.eq.s32.totalorder %s41, 1
      %p104 = por %p102, %p103
      %p106 = scmp.ne.s32.totalorder %s89, %s105
      %p107 = scmp.eq.s32.totalorder %s41, 0
      %p108 = por %p106, %p107
      %s109 = ssub.s32 %s42, %s54
      %p110 = scmp.eq.s32.totalorder %s109, 0
      %s112 = sadd.s32 %s111, 1
      %s113 = scalar_select %p110, %s111, %s112
      %p116 = pneg %p110
      %p117 = scmp.eq.s32.totalorder %s35, 1
      %p118 = por %p116, %p117
      %p119 = scmp.ne.s32.totalorder %s111, %s114
      %p120 = scmp.eq.s32.totalorder %s35, 0
      %p121 = por %p119, %p120
      %p122 = scmp.ne.s32.totalorder %s111, %s114
      %p123 = scmp.eq.s32.totalorder %s40, 1
      %p124 = por %p122, %p123
      %p125 = scmp.ne.s32.totalorder %s114, %s115
      %p126 = scmp.eq.s32.totalorder %s40, 0
      %p127 = por %p125, %p126
      %p128 = scmp.ne.s32.totalorder %s114, %s115
      %p129 = scmp.eq.s32.totalorder %s41, 1
      %p130 = por %p128, %p129
      %p132 = scmp.ne.s32.totalorder %s115, %s131
      %p133 = scmp.eq.s32.totalorder %s41, 0
      %p134 = por %p132, %p133
      %s136 = sadd.s32 %s135, 1
      %p139 = scmp.eq.s32.totalorder %s35, 1
      %p140 = scmp.ne.s32.totalorder %s135, %s137
      %p141 = scmp.eq.s32.totalorder %s35, 0
      %p142 = por %p140, %p141
      %p143 = scmp.ne.s32.totalorder %s135, %s137
      %p144 = scmp.eq.s32.totalorder %s40, 1
      %p145 = por %p143, %p144
      %p146 = scmp.ne.s32.totalorder %s137, %s138
      %p147 = scmp.eq.s32.totalorder %s40, 0
      %p148 = por %p146, %p147
      %p149 = scmp.ne.s32.totalorder %s137, %s138
      %p150 = scmp.eq.s32.totalorder %s41, 1
      %p151 = por %p149, %p150
      %p153 = scmp.ne.s32.totalorder %s138, %s152
      %p154 = scmp.eq.s32.totalorder %s41, 0
      %p155 = por %p153, %p154
      %s157 = sadd.s32 %s156, 1
      %p160 = scmp.eq.s32.totalorder %s35, 1
      %p161 = scmp.ne.s32.totalorder %s156, %s158
      %p162 = scmp.eq.s32.totalorder %s35, 0
      %p163 = por %p161, %p162
      %p164 = scmp.ne.s32.totalorder %s156, %s158
      %p165 = scmp.eq.s32.totalorder %s40, 1
      %p166 = por %p164, %p165
      %p167 = scmp.ne.s32.totalorder %s158, %s159
      %p168 = scmp.eq.s32.totalorder %s40, 0
      %p169 = por %p167, %p168
      %p170 = scmp.ne.s32.totalorder %s158, %s159
      %p171 = scmp.eq.s32.totalorder %s41, 1
      %p172 = por %p170, %p171
      %p174 = scmp.ne.s32.totalorder %s159, %s173
      %p175 = scmp.eq.s32.totalorder %s41, 0
      %p176 = por %p174, %p175
      %s178 = sadd.s32 %s177, 1
      %p181 = scmp.eq.s32.totalorder %s35, 1
      %p182 = scmp.ne.s32.totalorder %s177, %s179
      %p183 = scmp.eq.s32.totalorder %s35, 0
      %p184 = por %p182, %p183
      %p185 = scmp.ne.s32.totalorder %s177, %s179
      %p186 = scmp.eq.s32.totalorder %s40, 1
      %p187 = por %p185, %p186
      %p188 = scmp.ne.s32.totalorder %s179, %s180
      %p189 = scmp.eq.s32.totalorder %s40, 0
      %p190 = por %p188, %p189
      %p191 = scmp.ne.s32.totalorder %s179, %s180
      %p192 = scmp.eq.s32.totalorder %s41, 1
      %p193 = por %p191, %p192
      %p195 = scmp.ne.s32.totalorder %s180, %s194
      %p196 = scmp.eq.s32.totalorder %s41, 0
      %p197 = por %p195, %p196
      %s199 = sadd.s32 %s198, 1
      %p202 = scmp.eq.s32.totalorder %s35, 1
      %p203 = scmp.ne.s32.totalorder %s198, %s200
      %p204 = scmp.eq.s32.totalorder %s35, 0
      %p205 = por %p203, %p204
      %p206 = scmp.ne.s32.totalorder %s198, %s200
      %p207 = scmp.eq.s32.totalorder %s40, 1
      %p208 = por %p206, %p207
      %p209 = scmp.ne.s32.totalorder %s200, %s201
      %p210 = scmp.eq.s32.totalorder %s40, 0
      %p211 = por %p209, %p210
      %p212 = scmp.ne.s32.totalorder %s200, %s201
      %p213 = scmp.eq.s32.totalorder %s41, 1
      %p214 = por %p212, %p213
      %p216 = scmp.ne.s32.totalorder %s201, %s215
      %p217 = scmp.eq.s32.totalorder %s41, 0
      %p218 = por %p216, %p217
      %s220 = sadd.s32 %s219, 1
      %p223 = scmp.eq.s32.totalorder %s35, 1
      %p224 = scmp.ne.s32.totalorder %s219, %s221
      %p225 = scmp.eq.s32.totalorder %s35, 0
      %p226 = por %p224, %p225
      %p227 = scmp.ne.s32.totalorder %s219, %s221
      %p228 = scmp.eq.s32.totalorder %s40, 1
      %p229 = por %p227, %p228
      %p230 = scmp.ne.s32.totalorder %s221, %s222
      %p231 = scmp.eq.s32.totalorder %s40, 0
      %p232 = por %p230, %p231
      %p233 = scmp.ne.s32.totalorder %s221, %s222
      %p234 = scmp.eq.s32.totalorder %s41, 1
      %p235 = por %p233, %p234
      %p237 = scmp.ne.s32.totalorder %s222, %s236
      %p238 = scmp.eq.s32.totalorder %s41, 0
      %p239 = por %p237, %p238
      %s241 = sadd.s32 %s240, 1
      %p244 = scmp.eq.s32.totalorder %s35, 1
      %p245 = scmp.ne.s32.totalorder %s240, %s242
      %p246 = scmp.eq.s32.totalorder %s35, 0
      %p247 = por %p245, %p246
      %p248 = scmp.ne.s32.totalorder %s240, %s242
      %p249 = scmp.eq.s32.totalorder %s40, 1
      %p250 = por %p248, %p249
      %p251 = scmp.ne.s32.totalorder %s242, %s243
      %p252 = scmp.eq.s32.totalorder %s40, 0
      %p253 = por %p251, %p252
      %p254 = scmp.ne.s32.totalorder %s242, %s243
      %p255 = scmp.eq.s32.totalorder %s41, 1
      %p256 = por %p254, %p255
      %p258 = scmp.ne.s32.totalorder %s243, %s257
      %p259 = scmp.eq.s32.totalorder %s41, 0
      %p260 = por %p258, %p259
      %s262 = sadd.s32 %s261, 1
      %p265 = scmp.eq.s32.totalorder %s35, 1
      %p266 = scmp.ne.s32.totalorder %s261, %s263
      %p267 = scmp.eq.s32.totalorder %s35, 0
      %p268 = por %p266, %p267
      %p269 = scmp.ne.s32.totalorder %s261, %s263
      %p270 = scmp.eq.s32.totalorder %s40, 1
      %p271 = por %p269, %p270
      %p272 = scmp.ne.s32.totalorder %s263, %s264
      %p273 = scmp.eq.s32.totalorder %s40, 0
      %p274 = por %p272, %p273
      %p275 = scmp.ne.s32.totalorder %s263, %s264
      %p276 = scmp.eq.s32.totalorder %s41, 1
      %p277 = por %p275, %p276
      %p279 = scmp.ne.s32.totalorder %s264, %s278
      %p280 = scmp.eq.s32.totalorder %s41, 0
      %p281 = por %p279, %p280
      %s283 = sadd.s32 %s282, 1
      %p286 = scmp.eq.s32.totalorder %s35, 1
      %p287 = scmp.ne.s32.totalorder %s282, %s284
      %p288 = scmp.eq.s32.totalorder %s35, 0
      %p289 = por %p287, %p288
      %p290 = scmp.ne.s32.totalorder %s282, %s284
      %p291 = scmp.eq.s32.totalorder %s40, 1
      %p292 = por %p290, %p291
      %p293 = scmp.ne.s32.totalorder %s284, %s285
      %p294 = scmp.eq.s32.totalorder %s40, 0
      %p295 = por %p293, %p294
      %p296 = scmp.ne.s32.totalorder %s284, %s285
      %p297 = scmp.eq.s32.totalorder %s41, 1
      %p298 = por %p296, %p297
      %p300 = scmp.ne.s32.totalorder %s285, %s299
      %p301 = scmp.eq.s32.totalorder %s41, 0
      %p302 = por %p300, %p301
      %s303 = ssub.s32 %s42, %s54
      %s304 = ssub.s32 %s43, %s50
      %s305 = sor.u32 %s303, %s304
      %p306 = scmp.eq.s32.totalorder %s305, 0
      %s308 = sadd.s32 %s307, 1
      %s309 = scalar_select %p306, %s307, %s308
      %p312 = pneg %p306
      %p313 = scmp.eq.s32.totalorder %s35, 1
      %p314 = por %p312, %p313
      %p315 = scmp.ne.s32.totalorder %s307, %s310
      %p316 = scmp.eq.s32.totalorder %s35, 0
      %p317 = por %p315, %p316
      %p318 = scmp.ne.s32.totalorder %s307, %s310
      %p319 = scmp.eq.s32.totalorder %s40, 1
      %p320 = por %p318, %p319
      %p321 = scmp.ne.s32.totalorder %s310, %s311
      %p322 = scmp.eq.s32.totalorder %s40, 0
      %p323 = por %p321, %p322
      %p324 = scmp.ne.s32.totalorder %s310, %s311
      %p325 = scmp.eq.s32.totalorder %s41, 1
      %p326 = por %p324, %p325
      %p328 = scmp.ne.s32.totalorder %s311, %s327
      %p329 = scmp.eq.s32.totalorder %s41, 0
      %p330 = por %p328, %p329
      %s331 = ssub.s32 %s42, %s54
      %s332 = ssub.s32 %s43, %s50
      %s333 = sor.u32 %s331, %s332
      %p334 = scmp.eq.s32.totalorder %s333, 0
      %s336 = sadd.s32 %s335, 1
      %s337 = scalar_select %p334, %s335, %s336
      %p340 = pneg %p334
      %p341 = scmp.eq.s32.totalorder %s35, 1
      %p342 = por %p340, %p341
      %p343 = scmp.ne.s32.totalorder %s335, %s338
      %p344 = scmp.eq.s32.totalorder %s35, 0
      %p345 = por %p343, %p344
      %p346 = scmp.ne.s32.totalorder %s335, %s338
      %p347 = scmp.eq.s32.totalorder %s40, 1
      %p348 = por %p346, %p347
      %p349 = scmp.ne.s32.totalorder %s338, %s339
      %p350 = scmp.eq.s32.totalorder %s40, 0
      %p351 = por %p349, %p350
      %p352 = scmp.ne.s32.totalorder %s338, %s339
      %p353 = scmp.eq.s32.totalorder %s41, 1
      %p354 = por %p352, %p353
      %p356 = scmp.ne.s32.totalorder %s339, %s355
      %p357 = scmp.eq.s32.totalorder %s41, 0
      %p358 = por %p356, %p357
      %s359 = ssub.s32 %s42, %s54
      %s360 = ssub.s32 %s43, %s50
      %s361 = sor.u32 %s359, %s360
      %p362 = scmp.eq.s32.totalorder %s361, 0
      %s364 = sadd.s32 %s363, 1
      %s365 = scalar_select %p362, %s363, %s364
      %p368 = pneg %p362
      %p369 = scmp.eq.s32.totalorder %s35, 1
      %p370 = por %p368, %p369
      %p371 = scmp.ne.s32.totalorder %s363, %s366
      %p372 = scmp.eq.s32.totalorder %s35, 0
      %p373 = por %p371, %p372
      %p374 = scmp.ne.s32.totalorder %s363, %s366
      %p375 = scmp.eq.s32.totalorder %s40, 1
      %p376 = por %p374, %p375
      %p377 = scmp.ne.s32.totalorder %s366, %s367
      %p378 = scmp.eq.s32.totalorder %s40, 0
      %p379 = por %p377, %p378
      %p380 = scmp.ne.s32.totalorder %s366, %s367
      %p381 = scmp.eq.s32.totalorder %s41, 1
      %p382 = por %p380, %p381
      %p384 = scmp.ne.s32.totalorder %s367, %s383
      %p385 = scmp.eq.s32.totalorder %s41, 0
      %p386 = por %p384, %p385
      %s387 = ssub.s32 %s42, %s54
      %p388 = scmp.eq.s32.totalorder %s387, 0
      %s390 = sadd.s32 %s389, 1
      %s391 = scalar_select %p388, %s389, %s390
      %p394 = pneg %p388
      %p395 = scmp.eq.s32.totalorder %s35, 1
      %p396 = por %p394, %p395
      %p397 = scmp.ne.s32.totalorder %s389, %s392
      %p398 = scmp.eq.s32.totalorder %s35, 0
      %p399 = por %p397, %p398
      %p400 = scmp.ne.s32.totalorder %s389, %s392
      %p401 = scmp.eq.s32.totalorder %s40, 1
      %p402 = por %p400, %p401
      %p403 = scmp.ne.s32.totalorder %s392, %s393
      %p404 = scmp.eq.s32.totalorder %s40, 0
      %p405 = por %p403, %p404
      %p406 = scmp.ne.s32.totalorder %s392, %s393
      %p407 = scmp.eq.s32.totalorder %s41, 1
      %p408 = por %p406, %p407
      %p410 = scmp.ne.s32.totalorder %s393, %s409
      %p411 = scmp.eq.s32.totalorder %s41, 0
      %p412 = por %p410, %p411
      %s413 = ssub.s32 %s42, %s54
      %s414 = ssub.s32 %s43, %s50
      %s415 = sor.u32 %s413, %s414
      %p416 = scmp.eq.s32.totalorder %s415, 0
      %s418 = sadd.s32 %s417, 1
      %s419 = scalar_select %p416, %s417, %s418
      %p422 = pneg %p416
      %p423 = scmp.eq.s32.totalorder %s35, 1
      %p424 = por %p422, %p423
      %p425 = scmp.ne.s32.totalorder %s417, %s420
      %p426 = scmp.eq.s32.totalorder %s35, 0
      %p427 = por %p425, %p426
      %p428 = scmp.ne.s32.totalorder %s417, %s420
      %p429 = scmp.eq.s32.totalorder %s40, 1
      %p430 = por %p428, %p429
      %p431 = scmp.ne.s32.totalorder %s420, %s421
      %p432 = scmp.eq.s32.totalorder %s40, 0
      %p433 = por %p431, %p432
      %p434 = scmp.ne.s32.totalorder %s420, %s421
      %p435 = scmp.eq.s32.totalorder %s41, 1
      %p436 = por %p434, %p435
      %p438 = scmp.ne.s32.totalorder %s421, %s437
      %p439 = scmp.eq.s32.totalorder %s41, 0
      %p440 = por %p438, %p439
      %p441 = scmp.le.s32.totalorder 1, %s35
      %p442 = scmp.lt.s32.totalorder %s35, 3
      %p443 = pnand %p441, %p442
      %p444 = pneg %p443
      // Predicated region
      $region9: #{tpu_custom_call.1} parent=5 // pred_check
        _
      $region10: #{tpu_custom_call.1} parent=5 // pred_check_branch
        %446 = sbr.rel (%p443) target = $region12
      $region11: #{tpu_custom_call.1} parent=5 // pred_region
        %s447 = ssub.s32 %s35, 1
        // Predicated region
        $region13: #{tpu_custom_call.1} parent=11 // pred_check
          %p448 = pneg %p148
        $region14: #{tpu_custom_call.1} parent=11 // pred_check_branch
          %450 = sbr.rel (%p448) target = $region16
        $region15: #{tpu_custom_call.1} parent=11 // pred_region
          _
        $region16: #{tpu_custom_call.1} parent=11 // pred_fallthru
          _
        // Predicated region
        $region17: #{tpu_custom_call.1} parent=11 // pred_check
          %p451 = pneg %p169
        $region18: #{tpu_custom_call.1} parent=11 // pred_check_branch
          %453 = sbr.rel (%p451) target = $region20
        $region19: #{tpu_custom_call.1} parent=11 // pred_region
          %s455 = ssub.s32 256, 256
          %456 = vsyncadd [#allocation9], %s455
          %s457 = sshll.u32 [#allocation8], 4
          %s458 = int_to_ptr.vmem [resolvable:$true] %s457
          %463 = dma.hbm_to_vmem [thread:$0]  %s4, 256, %s458, [#allocation9], 64, 64, 4
        $region20: #{tpu_custom_call.1} parent=11 // pred_fallthru
          _
        // Predicated region
        $region21: #{tpu_custom_call.1} parent=11 // pred_check
          %p464 = pneg %p190
        $region22: #{tpu_custom_call.1} parent=11 // pred_check_branch
          %466 = sbr.rel (%p464) target = $region24
        $region23: #{tpu_custom_call.1} parent=11 // pred_region
          %s468 = ssub.s32 256, 256
          %469 = vsyncadd [#allocation9], %s468
          %s470 = sshll.u32 [#allocation10], 4
          %s471 = int_to_ptr.vmem [resolvable:$true] %s470
          %476 = dma.hbm_to_vmem [thread:$0]  %s5, 256, %s471, [#allocation9], 64, 64, 4
        $region24: #{tpu_custom_call.1} parent=11 // pred_fallthru
          _
        // Predicated region
        $region25: #{tpu_custom_call.1} parent=11 // pred_check
          %p477 = pneg %p211
        $region26: #{tpu_custom_call.1} parent=11 // pred_check_branch
          %479 = sbr.rel (%p477) target = $region28
        $region27: #{tpu_custom_call.1} parent=11 // pred_region
          _
        $region28: #{tpu_custom_call.1} parent=11 // pred_fallthru
          _
        // Predicated region
        $region29: #{tpu_custom_call.1} parent=11 // pred_check
          %p480 = pneg %p232
        $region30: #{tpu_custom_call.1} parent=11 // pred_check_branch
          %482 = sbr.rel (%p480) target = $region32
        $region31: #{tpu_custom_call.1} parent=11 // pred_region
          %s484 = ssub.s32 16, 16
          %485 = vsyncadd [#allocation12], %s484
          %s487 = sshll.u32 [#allocation11], 4
          %s488 = int_to_ptr.vmem [resolvable:$true] %s487
          %490 = dma.hbm_to_vmem [thread:$0]  %s7, 16, %s488, [#allocation12]
        $region32: #{tpu_custom_call.1} parent=11 // pred_fallthru
          _
        // Predicated region
        $region33: #{tpu_custom_call.1} parent=11 // pred_check
          %p491 = pneg %p253
        $region34: #{tpu_custom_call.1} parent=11 // pred_check_branch
          %493 = sbr.rel (%p491) target = $region36
        $region35: #{tpu_custom_call.1} parent=11 // pred_region
          %s495 = ssub.s32 16, 16
          %496 = vsyncadd [#allocation12], %s495
          %s498 = sshll.u32 [#allocation13], 4
          %s499 = int_to_ptr.vmem [resolvable:$true] %s498
          %501 = dma.hbm_to_vmem [thread:$0]  %s8, 16, %s499, [#allocation12]
        $region36: #{tpu_custom_call.1} parent=11 // pred_fallthru
          _
        // Predicated region
        $region37: #{tpu_custom_call.1} parent=11 // pred_check
          %p502 = pneg %p274
        $region38: #{tpu_custom_call.1} parent=11 // pred_check_branch
          %504 = sbr.rel (%p502) target = $region40
        $region39: #{tpu_custom_call.1} parent=11 // pred_region
          _
        $region40: #{tpu_custom_call.1} parent=11 // pred_fallthru
          _
        // Predicated region
        $region41: #{tpu_custom_call.1} parent=11 // pred_check
          %p505 = pneg %p295
        $region42: #{tpu_custom_call.1} parent=11 // pred_check_branch
          %507 = sbr.rel (%p505) target = $region44
        $region43: #{tpu_custom_call.1} parent=11 // pred_region
          _
        $region44: #{tpu_custom_call.1} parent=11 // pred_fallthru
          _
      $region12: #{tpu_custom_call.1} parent=5 // pred_fallthru
        _
      %p508 = scmp.lt.s32.totalorder %s35, 2
      // Predicated region
      $region45: #{tpu_custom_call.1} parent=5 // pred_check
        %p509 = pneg %p508
      $region46: #{tpu_custom_call.1} parent=5 // pred_check_branch
        %511 = sbr.rel (%p509) target = $region48
      $region47: #{tpu_custom_call.1} parent=5 // pred_region
        // Predicated region
        $region49: #{tpu_custom_call.1} parent=47 // pred_check
          %p512 = pneg %p69
        $region50: #{tpu_custom_call.1} parent=47 // pred_check_branch
          %514 = sbr.rel (%p512) target = $region52
        $region51: #{tpu_custom_call.1} parent=47 // pred_region
          %s515 = sand.u32 %s59, 1
          %s516 = scalar_lea.sflag [#allocation3], %s515
          %s517 = sand.u32 %s59, 1
          %s518 = smul.addr %s517, 4
          %s519 = scalar_lea.vmem [#allocation2], %s518
          %s521 = ssub.s32 64, 64
          %522 = vsyncadd %s516, %s521
          %s523 = sadd.s32 %s43, %s42
          %s524 = smul.addr %s523, 64
          %s525 = scalar_lea.hbm %s0, %s524
          %s527 = sshll.u32 %s519, 4
          %s528 = int_to_ptr.vmem [resolvable:$true] %s527
          %530 = dma.hbm_to_vmem [thread:$0]  %s525, 64, %s528, %s516
        $region52: #{tpu_custom_call.1} parent=47 // pred_fallthru
          _
        // Predicated region
        $region53: #{tpu_custom_call.1} parent=47 // pred_check
          %p531 = pneg %p95
        $region54: #{tpu_custom_call.1} parent=47 // pred_check_branch
          %533 = sbr.rel (%p531) target = $region56
        $region55: #{tpu_custom_call.1} parent=47 // pred_region
          %s534 = sand.u32 %s35, 1
          %s535 = scalar_lea.sflag [#allocation6], %s534
          %s536 = sand.u32 %s85, 1
          %s537 = smul.addr %s536, 4
          %s538 = scalar_lea.vmem [#allocation5], %s537
          %s540 = ssub.s32 64, 64
          %541 = vsyncadd %s535, %s540
          %s542 = smul.addr %s42, 64
          %s543 = scalar_lea.hbm %s1, %s542
          %s545 = sshll.u32 %s538, 4
          %s546 = int_to_ptr.vmem [resolvable:$true] %s545
          %548 = dma.hbm_to_vmem [thread:$0]  %s543, 64, %s546, %s535
        $region56: #{tpu_custom_call.1} parent=47 // pred_fallthru
          _
        // Predicated region
        $region57: #{tpu_custom_call.1} parent=47 // pred_check
          %p549 = pneg %p121
        $region58: #{tpu_custom_call.1} parent=47 // pred_check_branch
          %551 = sbr.rel (%p549) target = $region60
        $region59: #{tpu_custom_call.1} parent=47 // pred_region
          %s552 = sand.u32 %s35, 1
          %s553 = scalar_lea.sflag [#allocation6], %s552
          %s554 = sand.u32 %s111, 1
          %s555 = smul.addr %s554, 4
          %s556 = scalar_lea.vmem [#allocation7], %s555
          %s558 = ssub.s32 64, 64
          %559 = vsyncadd %s553, %s558
          %s560 = smul.addr %s42, 64
          %s561 = scalar_lea.hbm %s2, %s560
          %s563 = sshll.u32 %s556, 4
          %s564 = int_to_ptr.vmem [resolvable:$true] %s563
          %566 = dma.hbm_to_vmem [thread:$0]  %s561, 64, %s564, %s553
        $region60: #{tpu_custom_call.1} parent=47 // pred_fallthru
          _
        // Predicated region
        $region61: #{tpu_custom_call.1} parent=47 // pred_check
          %p567 = pneg %p317
        $region62: #{tpu_custom_call.1} parent=47 // pred_check_branch
          %569 = sbr.rel (%p567) target = $region64
        $region63: #{tpu_custom_call.1} parent=47 // pred_region
          %s570 = smul.u32 8, %s43
          %p571 = scmp.lt.s32.totalorder %s42, 1
          %s572 = scalar_select %p571, %s42, 1
          %p573 = scmp.lt.s32.totalorder %s570, 7
          %s574 = scalar_select %p573, %s570, 7
          %s575 = smul.addr %s572, 8
          %s576 = sadd.s32 %s574, %s575
          %s577 = smul.addr %s576, 4
          %s578 = scalar_lea.vmem %s11, %s577
          %s579 = smul.u32 8, %s43
        $region64: #{tpu_custom_call.1} parent=47 // pred_fallthru
          _
        // Predicated region
        $region65: #{tpu_custom_call.1} parent=47 // pred_check
          %p580 = pneg %p345
        $region66: #{tpu_custom_call.1} parent=47 // pred_check_branch
          %582 = sbr.rel (%p580) target = $region68
        $region67: #{tpu_custom_call.1} parent=47 // pred_region
          %s583 = sand.u32 %s35, 1
          %s584 = scalar_lea.sflag [#allocation15], %s583
          %s585 = sand.u32 %s335, 1
          %s586 = smul.addr %s585, 32
          %s587 = scalar_lea.vmem [#allocation14], %s586
          %s588 = smul.u32 8, %s43
          %s590 = ssub.s32 512, 512
          %591 = vsyncadd %s584, %s590
          %s592 = smul.addr %s42, 8
          %s593 = sadd.s32 %s588, %s592
          %s594 = smul.addr %s593, 64
          %s595 = scalar_lea.hbm %s12, %s594
          %s596 = sshll.u32 %s587, 4
          %s597 = int_to_ptr.vmem [resolvable:$true] %s596
          %602 = dma.hbm_to_vmem [thread:$0]  %s595, 512, %s597, %s584, 64, 64, 4
        $region68: #{tpu_custom_call.1} parent=47 // pred_fallthru
          _
        // Predicated region
        $region69: #{tpu_custom_call.1} parent=47 // pred_check
          %p603 = pneg %p373
        $region70: #{tpu_custom_call.1} parent=47 // pred_check_branch
          %605 = sbr.rel (%p603) target = $region72
        $region71: #{tpu_custom_call.1} parent=47 // pred_region
          %p606 = scmp.lt.s32.totalorder %s42, 1
          %s607 = scalar_select %p606, %s42, 1
          %p608 = scmp.lt.s32.totalorder %s43, 0
          %s609 = scalar_select %p608, %s43, 0
          %s610 = sadd.s32 %s609, %s607
          %s611 = smul.addr %s610, 8
          %s612 = scalar_lea.vmem %s13, %s611
        $region72: #{tpu_custom_call.1} parent=47 // pred_fallthru
          _
        // Predicated region
        $region73: #{tpu_custom_call.1} parent=47 // pred_check
          %p613 = pneg %p399
        $region74: #{tpu_custom_call.1} parent=47 // pred_check_branch
          %615 = sbr.rel (%p613) target = $region76
        $region75: #{tpu_custom_call.1} parent=47 // pred_region
          %s616 = sand.u32 %s35, 1
          %s617 = scalar_lea.sflag [#allocation15], %s616
          %s618 = sand.u32 %s389, 1
          %s619 = smul.addr %s618, 4
          %s620 = scalar_lea.vmem [#allocation16], %s619
          %s622 = ssub.s32 64, 64
          %623 = vsyncadd %s617, %s622
          %s624 = smul.addr %s42, 64
          %s625 = scalar_lea.hbm %s14, %s624
          %s627 = sshll.u32 %s620, 4
          %s628 = int_to_ptr.vmem [resolvable:$true] %s627
          %630 = dma.hbm_to_vmem [thread:$0]  %s625, 64, %s628, %s617
        $region76: #{tpu_custom_call.1} parent=47 // pred_fallthru
          _
      $region48: #{tpu_custom_call.1} parent=5 // pred_fallthru
        _
      %p631 = scmp.le.s32.totalorder 1, %s35
      %p632 = scmp.lt.s32.totalorder %s35, 3
      %p633 = pnand %p631, %p632
      %p634 = pneg %p633
      // Predicated region
      $region77: #{tpu_custom_call.1} parent=5 // pred_check
        _
      $region78: #{tpu_custom_call.1} parent=5 // pred_check_branch
        %636 = sbr.rel (%p633) target = $region80
      $region79: #{tpu_custom_call.1} parent=5 // pred_region
        %s637 = ssub.s32 %s35, 1
        %s638 = sand.u32 %s62, 1
        %s639 = scalar_lea.sflag [#allocation3], %s638
        %s640 = sand.u32 %s62, 1
        %s641 = smul.addr %s640, 4
        %s642 = scalar_lea.vmem [#allocation2], %s641
        // Predicated region
        $region81: #{tpu_custom_call.1} parent=79 // pred_check
          %p643 = pneg %p75
        $region82: #{tpu_custom_call.1} parent=79 // pred_check_branch
          %645 = sbr.rel (%p643) target = $region84
        $region83: #{tpu_custom_call.1} parent=79 // pred_region
          %646 = dma.done %s639, 64
        $region84: #{tpu_custom_call.1} parent=79 // pred_fallthru
          _
        %s647 = sand.u32 %s40, 1
        %s648 = scalar_lea.sflag [#allocation6], %s647
        %s649 = sand.u32 %s88, 1
        %s650 = smul.addr %s649, 4
        %s651 = scalar_lea.vmem [#allocation5], %s650
        // Predicated region
        $region85: #{tpu_custom_call.1} parent=79 // pred_check
          %p652 = pneg %p101
        $region86: #{tpu_custom_call.1} parent=79 // pred_check_branch
          %654 = sbr.rel (%p652) target = $region88
        $region87: #{tpu_custom_call.1} parent=79 // pred_region
          %655 = dma.done %s648, 64
        $region88: #{tpu_custom_call.1} parent=79 // pred_fallthru
          _
        %s656 = sand.u32 %s40, 1
        %s657 = scalar_lea.sflag [#allocation6], %s656
        %s658 = sand.u32 %s114, 1
        %s659 = smul.addr %s658, 4
        %s660 = scalar_lea.vmem [#allocation7], %s659
        // Predicated region
        $region89: #{tpu_custom_call.1} parent=79 // pred_check
          %p661 = pneg %p127
        $region90: #{tpu_custom_call.1} parent=79 // pred_check_branch
          %663 = sbr.rel (%p661) target = $region92
        $region91: #{tpu_custom_call.1} parent=79 // pred_region
          %664 = dma.done %s657, 64
        $region92: #{tpu_custom_call.1} parent=79 // pred_fallthru
          _
        // Predicated region
        $region93: #{tpu_custom_call.1} parent=79 // pred_check
          %p665 = pneg %p169
        $region94: #{tpu_custom_call.1} parent=79 // pred_check_branch
          %667 = sbr.rel (%p665) target = $region96
        $region95: #{tpu_custom_call.1} parent=79 // pred_region
          %668 = dma.done [#allocation9], 256
        $region96: #{tpu_custom_call.1} parent=79 // pred_fallthru
          _
        // Predicated region
        $region97: #{tpu_custom_call.1} parent=79 // pred_check
          %p669 = pneg %p190
        $region98: #{tpu_custom_call.1} parent=79 // pred_check_branch
          %671 = sbr.rel (%p669) target = $region100
        $region99: #{tpu_custom_call.1} parent=79 // pred_region
          %672 = dma.done [#allocation9], 256
        $region100: #{tpu_custom_call.1} parent=79 // pred_fallthru
          _
        // Predicated region
        $region101: #{tpu_custom_call.1} parent=79 // pred_check
          %p673 = pneg %p232
        $region102: #{tpu_custom_call.1} parent=79 // pred_check_branch
          %675 = sbr.rel (%p673) target = $region104
        $region103: #{tpu_custom_call.1} parent=79 // pred_region
          %676 = dma.done [#allocation12], 16
        $region104: #{tpu_custom_call.1} parent=79 // pred_fallthru
          _
        // Predicated region
        $region105: #{tpu_custom_call.1} parent=79 // pred_check
          %p677 = pneg %p253
        $region106: #{tpu_custom_call.1} parent=79 // pred_check_branch
          %679 = sbr.rel (%p677) target = $region108
        $region107: #{tpu_custom_call.1} parent=79 // pred_region
          %680 = dma.done [#allocation12], 16
        $region108: #{tpu_custom_call.1} parent=79 // pred_fallthru
          _
        %s681 = sand.u32 %s40, 1
        %s682 = scalar_lea.sflag [#allocation15], %s681
        %s683 = sand.u32 %s338, 1
        %s684 = smul.addr %s683, 32
        %s685 = scalar_lea.vmem [#allocation14], %s684
        // Predicated region
        $region109: #{tpu_custom_call.1} parent=79 // pred_check
          %p686 = pneg %p351
        $region110: #{tpu_custom_call.1} parent=79 // pred_check_branch
          %688 = sbr.rel (%p686) target = $region112
        $region111: #{tpu_custom_call.1} parent=79 // pred_region
          %689 = dma.done %s682, 512
        $region112: #{tpu_custom_call.1} parent=79 // pred_fallthru
          _
        %s690 = sand.u32 %s40, 1
        %s691 = scalar_lea.sflag [#allocation15], %s690
        %s692 = sand.u32 %s392, 1
        %s693 = smul.addr %s692, 4
        %s694 = scalar_lea.vmem [#allocation16], %s693
        // Predicated region
        $region113: #{tpu_custom_call.1} parent=79 // pred_check
          %p695 = pneg %p405
        $region114: #{tpu_custom_call.1} parent=79 // pred_check_branch
          %697 = sbr.rel (%p695) target = $region116
        $region115: #{tpu_custom_call.1} parent=79 // pred_region
          %698 = dma.done %s691, 64
        $region116: #{tpu_custom_call.1} parent=79 // pred_fallthru
          _
        %s699 = sand.u32 %s62, 1
        %s700 = scalar_lea.sflag [#allocation3], %s699
        %s701 = sand.u32 %s62, 1
        %s702 = smul.addr %s701, 4
        %s703 = scalar_lea.vmem [#allocation2], %s702
        %p704 = pneg %p75
        %p705 = pneg %p72
        %s706 = sand.u32 %s40, 1
        %s707 = scalar_lea.sflag [#allocation6], %s706
        %s708 = sand.u32 %s88, 1
        %s709 = smul.addr %s708, 4
        %s710 = scalar_lea.vmem [#allocation5], %s709
        %p711 = pneg %p101
        %p712 = pneg %p98
        %s713 = sand.u32 %s40, 1
        %s714 = scalar_lea.sflag [#allocation6], %s713
        %s715 = sand.u32 %s114, 1
        %s716 = smul.addr %s715, 4
        %s717 = scalar_lea.vmem [#allocation7], %s716
        %p718 = pneg %p127
        %p719 = pneg %p124
        %p720 = pneg %p148
        %p721 = pneg %p145
        %p722 = pneg %p169
        %p723 = pneg %p166
        %p724 = pneg %p190
        %p725 = pneg %p187
        %p726 = pneg %p211
        %p727 = pneg %p208
        %p728 = pneg %p232
        %p729 = pneg %p229
        %p730 = pneg %p253
        %p731 = pneg %p250
        %p732 = pneg %p274
        %p733 = pneg %p271
        %p734 = pneg %p295
        %p735 = pneg %p292
        %s736 = smul.u32 8, %s45
        %p737 = scmp.lt.s32.totalorder %s44, 1
        %s738 = scalar_select %p737, %s44, 1
        %p739 = scmp.lt.s32.totalorder %s736, 7
        %s740 = scalar_select %p739, %s736, 7
        %s741 = smul.addr %s738, 8
        %s742 = sadd.s32 %s740, %s741
        %s743 = smul.addr %s742, 4
        %s744 = scalar_lea.vmem %s11, %s743
        %p745 = pneg %p323
        %p746 = pneg %p320
        %s747 = sand.u32 %s40, 1
        %s748 = scalar_lea.sflag [#allocation15], %s747
        %s749 = sand.u32 %s338, 1
        %s750 = smul.addr %s749, 32
        %s751 = scalar_lea.vmem [#allocation14], %s750
        %p752 = pneg %p351
        %p753 = pneg %p348
        %p754 = scmp.lt.s32.totalorder %s44, 1
        %s755 = scalar_select %p754, %s44, 1
        %p756 = scmp.lt.s32.totalorder %s45, 0
        %s757 = scalar_select %p756, %s45, 0
        %s758 = sadd.s32 %s757, %s755
        %s759 = smul.addr %s758, 8
        %s760 = scalar_lea.vmem %s13, %s759
        %p761 = pneg %p379
        %p762 = pneg %p376
        %s763 = sand.u32 %s40, 1
        %s764 = scalar_lea.sflag [#allocation15], %s763
        %s765 = sand.u32 %s392, 1
        %s766 = smul.addr %s765, 4
        %s767 = scalar_lea.vmem [#allocation16], %s766
        %p768 = pneg %p405
        %p769 = pneg %p402
        %p770 = pneg %p433
        %p771 = pneg %p430
        %s772 = sand.u32 %s420, 1
        %s773 = scalar_lea.sflag [#allocation4], %s772
        %s774 = sand.u32 %s420, 1
        %s775 = smul.addr %s774, 8
        %s776 = scalar_lea.vmem [#allocation17], %s775
        %s777 = smul.u32 8, %s45
        %p778 = scmp.lt.s32.totalorder %s44, 1
        %s779 = scalar_select %p778, %s44, 1
        %p780 = scmp.lt.s32.totalorder %s777, 7
        %s781 = scalar_select %p780, %s777, 7
        %s782 = smul.addr %s779, 8
        %s783 = sadd.s32 %s781, %s782
        %s784 = smul.addr %s783, 4
        %s785 = scalar_lea.vmem %s11, %s784
        %s786 = smul.u32 8, %s45
        %s787 = smul.u32 8, %s45
        %p788 = scmp.lt.s32.totalorder %s44, 1
        %s789 = scalar_select %p788, %s44, 1
        %p790 = scmp.lt.s32.totalorder %s45, 0
        %s791 = scalar_select %p790, %s45, 0
        %s792 = sadd.s32 %s791, %s789
        %s793 = smul.addr %s792, 8
        %s794 = scalar_lea.vmem %s13, %s793
        %v796 = vld [vmem:[%s642] sm:$0xf]
        %v797 = vld [vmem:[%s3] sm:$0xf]
        %v798 = vld [vmem:[%s3 + $0x4] sm:$0xf]
        %v799 = vld [vmem:[%s3 + $0x8] sm:$0xf]
        %v800 = vld [vmem:[%s3 + $0xc] sm:$0xf]
        %v801 = vld [vmem:[%s6] sm:$0x1]
        %v803 = vlaneseq
        %v804 = vshrl.u32 %v803, 7
        %v805 = vsub.s32 0, %v804
        %v806 = vrot.slane %v801, %v805
        %v812 = vunpack.c.l.b16 %v797
        %v813 = vunpack.c.l.b16 %v798
        %v814 = vunpack.c.l.b16 %v799
        %v815 = vunpack.c.l.b16 %v800
        %v816 = vpack.c.b16 %v813, %v812
        %v817 = vpack.c.b16 %v815, %v814
        %vm820 = vcmask 261120
        %v822 = vsel %vm820, %v796, 0
        %824 = vmatprep.subr.bf16.mxu0 0
        %825 = vmatpush1.bf16.msra.mxu0 %v816
        %826 = vmatprep.subr.bf16.mxu0 0
        %827 = vmatpush1.bf16.msra.mxu0 %v817
        %828 = vmatprep.subr.bf16.mxu0 0
        %829 = vmatpush1.bf16.msra.mxu0 0
        %830 = vmatprep.subr.bf16.mxu0 0
        %831 = vmatpush1.bf16.msra.mxu0 0
        %832 = vmatprep.subr.bf16.mxu0 0
        %833 = vmatpush1.bf16.msra.mxu0 0
        %834 = vmatprep.subr.bf16.mxu0 0
        %835 = vmatpush1.bf16.msra.mxu0 0
        %836 = vmatprep.subr.bf16.mxu0 0
        %837 = vmatpush1.bf16.msra.mxu0 0
        %838 = vmatprep.subr.bf16.mxu0 0
        %839 = vmatpush1.bf16.msra.mxu0 0
        %840 = vmatprep.subr.bf16.mxu0 0
        %841 = vmatpush1.bf16.msra.mxu0 0
        %842 = vmatprep.subr.bf16.mxu0 0
        %843 = vmatpush1.bf16.msra.mxu0 0
        %844 = vmatprep.subr.bf16.mxu0 0
        %845 = vmatpush1.bf16.msra.mxu0 0
        %846 = vmatprep.subr.bf16.mxu0 0
        %847 = vmatpush1.bf16.msra.mxu0 0
        %848 = vmatprep.subr.bf16.mxu0 0
        %849 = vmatpush1.bf16.msra.mxu0 0
        %850 = vmatprep.subr.bf16.mxu0 0
        %851 = vmatpush1.bf16.msra.mxu0 0
        %852 = vmatprep.subr.bf16.mxu0 0
        %853 = vmatpush1.bf16.msra.mxu0 0
        %854 = vmatprep.subr.bf16.mxu0 0
        %855 = vmatpush1.bf16.msra.mxu0 0
        %856 = vmatprep.mubr.bf16.mxu0 0
        %857 = vmatmul.mubr.bf16.gmra.mrb[0].mxu0 %v822
        %v858 = vpop.f32.mrb[0].mxu0
        %v859 = vadd.f32 %v806, %v858
        %v860 = vpop.f32.mrb[0].mxu0
        %v861 = vpop.f32.mrb[0].mxu0
        %v862 = vpop.f32.mrb[0].mxu0
        %863 = vdwg.mxu0
        %v864 = vld [vmem:[%s651] sm:$0xf]
        %v865 = vld [vmem:[#allocation8] sm:$0xf]
        %v866 = vld [vmem:[#allocation8 + $0x4] sm:$0xf]
        %v867 = vld [vmem:[#allocation8 + $0x8] sm:$0xf]
        %v868 = vld [vmem:[#allocation8 + $0xc] sm:$0xf]
        %v869 = vld [vmem:[#allocation11] sm:$0x1]
        %v871 = vlaneseq
        %v872 = vshrl.u32 %v871, 7
        %v873 = vsub.s32 0, %v872
        %v874 = vrot.slane %v869, %v873
        %v880 = vunpack.c.l.b16 %v865
        %v881 = vunpack.c.l.b16 %v866
        %v882 = vunpack.c.l.b16 %v867
        %v883 = vunpack.c.l.b16 %v868
        %v884 = vpack.c.b16 %v881, %v880
        %v885 = vpack.c.b16 %v883, %v882
        %v889 = vsel %vm820, %v864, 0
        %891 = vmatprep.subr.bf16.mxu0 0
        %892 = vmatpush1.bf16.msra.mxu0 %v884
        %893 = vmatprep.subr.bf16.mxu0 0
        %894 = vmatpush1.bf16.msra.mxu0 %v885
        %895 = vmatprep.subr.bf16.mxu0 0
        %896 = vmatpush1.bf16.msra.mxu0 0
        %897 = vmatprep.subr.bf16.mxu0 0
        %898 = vmatpush1.bf16.msra.mxu0 0
        %899 = vmatprep.subr.bf16.mxu0 0
        %900 = vmatpush1.bf16.msra.mxu0 0
        %901 = vmatprep.subr.bf16.mxu0 0
        %902 = vmatpush1.bf16.msra.mxu0 0
        %903 = vmatprep.subr.bf16.mxu0 0
        %904 = vmatpush1.bf16.msra.mxu0 0
        %905 = vmatprep.subr.bf16.mxu0 0
        %906 = vmatpush1.bf16.msra.mxu0 0
        %907 = vmatprep.subr.bf16.mxu0 0
        %908 = vmatpush1.bf16.msra.mxu0 0
        %909 = vmatprep.subr.bf16.mxu0 0
        %910 = vmatpush1.bf16.msra.mxu0 0
        %911 = vmatprep.subr.bf16.mxu0 0
        %912 = vmatpush1.bf16.msra.mxu0 0
        %913 = vmatprep.subr.bf16.mxu0 0
        %914 = vmatpush1.bf16.msra.mxu0 0
        %915 = vmatprep.subr.bf16.mxu0 0
        %916 = vmatpush1.bf16.msra.mxu0 0
        %917 = vmatprep.subr.bf16.mxu0 0
        %918 = vmatpush1.bf16.msra.mxu0 0
        %919 = vmatprep.subr.bf16.mxu0 0
        %920 = vmatpush1.bf16.msra.mxu0 0
        %921 = vmatprep.subr.bf16.mxu0 0
        %922 = vmatpush1.bf16.msra.mxu0 0
        %923 = vmatprep.mubr.bf16.mxu0 0
        %924 = vmatmul.mubr.bf16.gmra.mrb[0].mxu0 %v889
        %v925 = vpop.f32.mrb[0].mxu0
        %v926 = vadd.f32 %v874, %v925
        %v927 = vpop.f32.mrb[0].mxu0
        %v928 = vpop.f32.mrb[0].mxu0
        %v929 = vpop.f32.mrb[0].mxu0
        %930 = vdwg.mxu0
        %v931 = vld [vmem:[%s660] sm:$0xf]
        %v932 = vld [vmem:[#allocation10] sm:$0xf]
        %v933 = vld [vmem:[#allocation10 + $0x4] sm:$0xf]
        %v934 = vld [vmem:[#allocation10 + $0x8] sm:$0xf]
        %v935 = vld [vmem:[#allocation10 + $0xc] sm:$0xf]
        %v936 = vld [vmem:[#allocation13] sm:$0x1]
        %v938 = vlaneseq
        %v939 = vshrl.u32 %v938, 7
        %v940 = vsub.s32 0, %v939
        %v941 = vrot.slane %v936, %v940
        %v947 = vunpack.c.l.b16 %v932
        %v948 = vunpack.c.l.b16 %v933
        %v949 = vunpack.c.l.b16 %v934
        %v950 = vunpack.c.l.b16 %v935
        %v951 = vpack.c.b16 %v948, %v947
        %v952 = vpack.c.b16 %v950, %v949
        %v956 = vsel %vm820, %v931, 0
        %958 = vmatprep.subr.bf16.mxu0 0
        %959 = vmatpush1.bf16.msra.mxu0 %v951
        %960 = vmatprep.subr.bf16.mxu0 0
        %961 = vmatpush1.bf16.msra.mxu0 %v952
        %962 = vmatprep.subr.bf16.mxu0 0
        %963 = vmatpush1.bf16.msra.mxu0 0
        %964 = vmatprep.subr.bf16.mxu0 0
        %965 = vmatpush1.bf16.msra.mxu0 0
        %966 = vmatprep.subr.bf16.mxu0 0
        %967 = vmatpush1.bf16.msra.mxu0 0
        %968 = vmatprep.subr.bf16.mxu0 0
        %969 = vmatpush1.bf16.msra.mxu0 0
        %970 = vmatprep.subr.bf16.mxu0 0
        %971 = vmatpush1.bf16.msra.mxu0 0
        %972 = vmatprep.subr.bf16.mxu0 0
        %973 = vmatpush1.bf16.msra.mxu0 0
        %974 = vmatprep.subr.bf16.mxu0 0
        %975 = vmatpush1.bf16.msra.mxu0 0
        %976 = vmatprep.subr.bf16.mxu0 0
        %977 = vmatpush1.bf16.msra.mxu0 0
        %978 = vmatprep.subr.bf16.mxu0 0
        %979 = vmatpush1.bf16.msra.mxu0 0
        %980 = vmatprep.subr.bf16.mxu0 0
        %981 = vmatpush1.bf16.msra.mxu0 0
        %982 = vmatprep.subr.bf16.mxu0 0
        %983 = vmatpush1.bf16.msra.mxu0 0
        %984 = vmatprep.subr.bf16.mxu0 0
        %985 = vmatpush1.bf16.msra.mxu0 0
        %986 = vmatprep.subr.bf16.mxu0 0
        %987 = vmatpush1.bf16.msra.mxu0 0
        %988 = vmatprep.subr.bf16.mxu0 0
        %989 = vmatpush1.bf16.msra.mxu0 0
        %990 = vmatprep.mubr.bf16.mxu0 0
        %991 = vmatmul.mubr.bf16.gmra.mrb[0].mxu0 %v956
        %v992 = vpop.f32.mrb[0].mxu0
        %v993 = vadd.f32 %v941, %v992
        %v994 = vpop.f32.mrb[0].mxu0
        %v995 = vpop.f32.mrb[0].mxu0
        %v996 = vpop.f32.mrb[0].mxu0
        %997 = vdwg.mxu0
        %v998 = vpack.c.bf16 %v859, %v859
        %v999 = vpack.c.bf16 %v926, %v926
        %v1000 = vpack.c.bf16 %v993, %v993
        %v1001 = vld [vmem:[%s785] sm:$0xf]
        %v1002 = vld [vmem:[%s785 + $0x4] sm:$0xf]
        %v1003 = vld [vmem:[%s785 + $0x8] sm:$0xf]
        %v1004 = vld [vmem:[%s785 + $0xc] sm:$0xf]
        %v1005 = vld [vmem:[%s785 + $0x10] sm:$0xf]
        %v1006 = vld [vmem:[%s785 + $0x14] sm:$0xf]
        %v1007 = vld [vmem:[%s785 + $0x18] sm:$0xf]
        %v1008 = vld [vmem:[%s785 + $0x1c] sm:$0xf]
        %v1009 = vadd.bf16 %v999, %v1001
        %v1010 = vadd.bf16 %v999, %v1002
        %v1011 = vadd.bf16 %v999, %v1003
        %v1012 = vadd.bf16 %v999, %v1004
        %v1013 = vadd.bf16 %v999, %v1005
        %v1014 = vadd.bf16 %v999, %v1006
        %v1015 = vadd.bf16 %v999, %v1007
        %v1016 = vadd.bf16 %v999, %v1008
        %v1019 = vunpack.c.l.s4 1966171168
        %v1020 = vunpack.c.0.s8 %v1019
        %v1021 = vlaneseq
        %v1022 = vshrl.u32 %v1021, 7
        %v1023 = vsub.s32 %v1020, %v1022
        %v1024 = vrot.slane %v998, %v1023
        %v1025 = vcombine.high %v1024, %v1024
        %v1027 = vunpack.c.l.s4 1966171168
        %v1028 = vunpack.c.0.s8 %v1027
        %v1029 = vlaneseq
        %v1030 = vshrl.u32 %v1029, 7
        %v1031 = vsub.s32 %v1028, %v1030
        %v1032 = vrot.slane %v1024, %v1031
        %v1034 = vunpack.c.l.s4 1966171168
        %v1035 = vunpack.c.0.s8 %v1034
        %v1036 = vlaneseq
        %v1037 = vshrl.u32 %v1036, 7
        %v1038 = vsub.s32 %v1035, %v1037
        %v1039 = vrot.slane %v1025, %v1038
        %v1040 = vcombine.high %v1032, %v1032
        %v1041 = vcombine.high %v1039, %v1039
        %v1042 = vunpack.i.l.s16 %v1032
        %v1043 = vunpack.i.h.s16 %v1032
        %v1044 = vunpack.i.l.s16 %v1039
        %v1045 = vunpack.i.h.s16 %v1039
        %v1046 = vunpack.i.l.s16 %v1040
        %v1047 = vunpack.i.h.s16 %v1040
        %v1048 = vunpack.i.l.s16 %v1041
        %v1049 = vunpack.i.h.s16 %v1041
        %v1050 = vpack.i.b16 %v1042, %v1042
        %v1051 = vpack.i.b16 %v1043, %v1043
        %v1052 = vpack.i.b16 %v1044, %v1044
        %v1053 = vpack.i.b16 %v1045, %v1045
        %v1054 = vpack.i.b16 %v1046, %v1046
        %v1055 = vpack.i.b16 %v1047, %v1047
        %v1056 = vpack.i.b16 %v1048, %v1048
        %v1057 = vpack.i.b16 %v1049, %v1049
        %v1058 = vlaneseq
        %v1059 = vshrl.u32 %v1058, 7
        %v1060 = vsub.s32 0, %v1059
        %v1061 = vrot.slane %v1050, %v1060
        %v1062 = vlaneseq
        %v1063 = vshrl.u32 %v1062, 7
        %v1064 = vsub.s32 0, %v1063
        %v1065 = vrot.slane %v1051, %v1064
        %v1066 = vlaneseq
        %v1067 = vshrl.u32 %v1066, 7
        %v1068 = vsub.s32 0, %v1067
        %v1069 = vrot.slane %v1052, %v1068
        %v1070 = vlaneseq
        %v1071 = vshrl.u32 %v1070, 7
        %v1072 = vsub.s32 0, %v1071
        %v1073 = vrot.slane %v1053, %v1072
        %v1074 = vlaneseq
        %v1075 = vshrl.u32 %v1074, 7
        %v1076 = vsub.s32 0, %v1075
        %v1077 = vrot.slane %v1054, %v1076
        %v1078 = vlaneseq
        %v1079 = vshrl.u32 %v1078, 7
        %v1080 = vsub.s32 0, %v1079
        %v1081 = vrot.slane %v1055, %v1080
        %v1082 = vlaneseq
        %v1083 = vshrl.u32 %v1082, 7
        %v1084 = vsub.s32 0, %v1083
        %v1085 = vrot.slane %v1056, %v1084
        %v1086 = vlaneseq
        %v1087 = vshrl.u32 %v1086, 7
        %v1088 = vsub.s32 0, %v1087
        %v1089 = vrot.slane %v1057, %v1088
        %v1091 = vpack.i.b16 %v1061, %v1061
        %v1093 = vlaneseq
        %v1094 = vshrl.u32 %v1093, 7
        %v1095 = vsub.s32 0, %v1094
        %v1096 = vrot.slane %v1091, %v1095
        %v1098 = vpack.i.b16 %v1065, %v1065
        %v1100 = vlaneseq
        %v1101 = vshrl.u32 %v1100, 7
        %v1102 = vsub.s32 0, %v1101
        %v1103 = vrot.slane %v1098, %v1102
        %v1105 = vpack.i.b16 %v1069, %v1069
        %v1107 = vlaneseq
        %v1108 = vshrl.u32 %v1107, 7
        %v1109 = vsub.s32 0, %v1108
        %v1110 = vrot.slane %v1105, %v1109
        %v1112 = vpack.i.b16 %v1073, %v1073
        %v1114 = vlaneseq
        %v1115 = vshrl.u32 %v1114, 7
        %v1116 = vsub.s32 0, %v1115
        %v1117 = vrot.slane %v1112, %v1116
        %v1119 = vpack.i.b16 %v1077, %v1077
        %v1121 = vlaneseq
        %v1122 = vshrl.u32 %v1121, 7
        %v1123 = vsub.s32 0, %v1122
        %v1124 = vrot.slane %v1119, %v1123
        %v1126 = vpack.i.b16 %v1081, %v1081
        %v1128 = vlaneseq
        %v1129 = vshrl.u32 %v1128, 7
        %v1130 = vsub.s32 0, %v1129
        %v1131 = vrot.slane %v1126, %v1130
        %v1133 = vpack.i.b16 %v1085, %v1085
        %v1135 = vlaneseq
        %v1136 = vshrl.u32 %v1135, 7
        %v1137 = vsub.s32 0, %v1136
        %v1138 = vrot.slane %v1133, %v1137
        %v1140 = vpack.i.b16 %v1089, %v1089
        %v1142 = vlaneseq
        %v1143 = vshrl.u32 %v1142, 7
        %v1144 = vsub.s32 0, %v1143
        %v1145 = vrot.slane %v1140, %v1144
        %v1146 = vmul.bf16 %v1096, %v1009
        %v1147 = vmul.bf16 %v1103, %v1010
        %v1148 = vmul.bf16 %v1110, %v1011
        %v1149 = vmul.bf16 %v1117, %v1012
        %v1150 = vmul.bf16 %v1124, %v1013
        %v1151 = vmul.bf16 %v1131, %v1014
        %v1152 = vmul.bf16 %v1138, %v1015
        %v1153 = vmul.bf16 %v1145, %v1016
        %v1154 = vld [vmem:[%s9] sm:$0xf]
        %v1155 = vld [vmem:[%s9 + $0x4] sm:$0xf]
        %v1156 = vld [vmem:[%s9 + $0x8] sm:$0xf]
        %v1157 = vld [vmem:[%s9 + $0xc] sm:$0xf]
        %v1166 = vunpack.c.l.b16 %v1146
        %v1167 = vunpack.c.l.b16 %v1147
        %v1168 = vunpack.c.l.b16 %v1148
        %v1169 = vunpack.c.l.b16 %v1149
        %v1170 = vunpack.c.l.b16 %v1150
        %v1171 = vunpack.c.l.b16 %v1151
        %v1172 = vunpack.c.l.b16 %v1152
        %v1173 = vunpack.c.l.b16 %v1153
        %v1174 = vpack.c.b16 %v1167, %v1166
        %v1175 = vpack.c.b16 %v1169, %v1168
        %v1176 = vpack.c.b16 %v1171, %v1170
        %v1177 = vpack.c.b16 %v1173, %v1172
        %v1182 = vunpack.c.l.b16 %v1154
        %v1183 = vunpack.c.l.b16 %v1155
        %v1184 = vunpack.c.l.b16 %v1156
        %v1185 = vunpack.c.l.b16 %v1157
        %v1186 = vpack.c.b16 %v1183, %v1182
        %v1187 = vpack.c.b16 %v1185, %v1184
        %v1191 = vsel %vm820, %v1174, 0
        %v1194 = vsel %vm820, %v1175, 0
        %v1197 = vsel %vm820, %v1176, 0
        %v1200 = vsel %vm820, %v1177, 0
        %1202 = vmatprep.subr.bf16.mxu0 0
        %1203 = vmatpush1.bf16.msra.mxu0 %v1186
        %1204 = vmatprep.subr.bf16.mxu0 0
        %1205 = vmatpush1.bf16.msra.mxu0 %v1187
        %1206 = vmatprep.subr.bf16.mxu0 0
        %1207 = vmatpush1.bf16.msra.mxu0 0
        %1208 = vmatprep.subr.bf16.mxu0 0
        %1209 = vmatpush1.bf16.msra.mxu0 0
        %1210 = vmatprep.subr.bf16.mxu0 0
        %1211 = vmatpush1.bf16.msra.mxu0 0
        %1212 = vmatprep.subr.bf16.mxu0 0
        %1213 = vmatpush1.bf16.msra.mxu0 0
        %1214 = vmatprep.subr.bf16.mxu0 0
        %1215 = vmatpush1.bf16.msra.mxu0 0
        %1216 = vmatprep.subr.bf16.mxu0 0
        %1217 = vmatpush1.bf16.msra.mxu0 0
        %1218 = vmatprep.subr.bf16.mxu0 0
        %1219 = vmatpush1.bf16.msra.mxu0 0
        %1220 = vmatprep.subr.bf16.mxu0 0
        %1221 = vmatpush1.bf16.msra.mxu0 0
        %1222 = vmatprep.subr.bf16.mxu0 0
        %1223 = vmatpush1.bf16.msra.mxu0 0
        %1224 = vmatprep.subr.bf16.mxu0 0
        %1225 = vmatpush1.bf16.msra.mxu0 0
        %1226 = vmatprep.subr.bf16.mxu0 0
        %1227 = vmatpush1.bf16.msra.mxu0 0
        %1228 = vmatprep.subr.bf16.mxu0 0
        %1229 = vmatpush1.bf16.msra.mxu0 0
        %1230 = vmatprep.subr.bf16.mxu0 0
        %1231 = vmatpush1.bf16.msra.mxu0 0
        %1232 = vmatprep.subr.bf16.mxu0 0
        %1233 = vmatpush1.bf16.msra.mxu0 0
        %1234 = vmatprep.mubr.bf16.mxu0 0
        %1235 = vmatmul.mubr.bf16.gmra.mrb[0].mxu0 %v1191
        %v1236 = vpop.f32.mrb[0].mxu0
        %v1237 = vadd.f32 0.0, %v1236
        %v1238 = vpop.f32.mrb[0].mxu0
        %v1239 = vpop.f32.mrb[0].mxu0
        %v1240 = vadd.f32 0.0, %v1239
        %v1241 = vpop.f32.mrb[0].mxu0
        %1242 = vmatprep.mubr.bf16.mxu0 0
        %1243 = vmatmul.mubr.bf16.gmra.mrb[0].mxu0 %v1194
        %v1244 = vpop.f32.mrb[0].mxu0
        %v1245 = vadd.f32 0.0, %v1244
        %v1246 = vpop.f32.mrb[0].mxu0
        %v1247 = vpop.f32.mrb[0].mxu0
        %v1248 = vadd.f32 0.0, %v1247
        %v1249 = vpop.f32.mrb[0].mxu0
        %1250 = vmatprep.mubr.bf16.mxu0 0
        %1251 = vmatmul.mubr.bf16.gmra.mrb[0].mxu0 %v1197
        %v1252 = vpop.f32.mrb[0].mxu0
        %v1253 = vadd.f32 0.0, %v1252
        %v1254 = vpop.f32.mrb[0].mxu0
        %v1255 = vpop.f32.mrb[0].mxu0
        %v1256 = vadd.f32 0.0, %v1255
        %v1257 = vpop.f32.mrb[0].mxu0
        %1258 = vmatprep.mubr.bf16.mxu0 0
        %1259 = vmatmul.mubr.bf16.gmra.mrb[0].mxu0 %v1200
        %v1260 = vpop.f32.mrb[0].mxu0
        %v1261 = vadd.f32 0.0, %v1260
        %v1262 = vpop.f32.mrb[0].mxu0
        %v1263 = vpop.f32.mrb[0].mxu0
        %v1264 = vadd.f32 0.0, %v1263
        %v1265 = vpop.f32.mrb[0].mxu0
        %1266 = vdwg.mxu0
        %1267 = vxpose.xlu0.b32.start [1/16] %v1237, 128
        %1268 = vxpose.xlu0.b32.cont [2/16] 0.0, 128
        %1269 = vxpose.xlu0.b32.cont [3/16] 0.0, 128
        %1270 = vxpose.xlu0.b32.cont [4/16] 0.0, 128
        %1271 = vxpose.xlu0.b32.cont [5/16] 0.0, 128
        %1272 = vxpose.xlu0.b32.cont [6/16] 0.0, 128
        %1273 = vxpose.xlu0.b32.cont [7/16] 0.0, 128
        %1274 = vxpose.xlu0.b32.cont [8/16] 0.0, 128
        %1275 = vxpose.xlu0.b32.cont [9/16] 0.0, 128
        %1276 = vxpose.xlu0.b32.cont [10/16] 0.0, 128
        %1277 = vxpose.xlu0.b32.cont [11/16] 0.0, 128
        %1278 = vxpose.xlu0.b32.cont [12/16] 0.0, 128
        %1279 = vxpose.xlu0.b32.cont [13/16] 0.0, 128
        %1280 = vxpose.xlu0.b32.cont [14/16] 0.0, 128
        %1281 = vxpose.xlu0.b32.cont [15/16] 0.0, 128
        %1282 = vxpose.xlu0.b32.end [16/16] 0.0, 128
        %v1283 = vpop.trf.xlu0
        %v1284 = vpop.trf.xlu0
        %v1285 = vpop.trf.xlu0
        %v1286 = vpop.trf.xlu0
        %v1287 = vpop.trf.xlu0
        %v1288 = vpop.trf.xlu0
        %v1289 = vpop.trf.xlu0
        %v1290 = vpop.trf.xlu0
        %v1291 = vpop.trf.xlu0
        %v1292 = vpop.trf.xlu0
        %v1293 = vpop.trf.xlu0
        %v1294 = vpop.trf.xlu0
        %v1295 = vpop.trf.xlu0
        %v1296 = vpop.trf.xlu0
        %v1297 = vpop.trf.xlu0
        %v1298 = vpop.trf.xlu0
        %1299 = vxpose.xlu0.b32.start [1/16] %v1240, 128
        %1300 = vxpose.xlu0.b32.cont [2/16] 0.0, 128
        %1301 = vxpose.xlu0.b32.cont [3/16] 0.0, 128
        %1302 = vxpose.xlu0.b32.cont [4/16] 0.0, 128
        %1303 = vxpose.xlu0.b32.cont [5/16] 0.0, 128
        %1304 = vxpose.xlu0.b32.cont [6/16] 0.0, 128
        %1305 = vxpose.xlu0.b32.cont [7/16] 0.0, 128
        %1306 = vxpose.xlu0.b32.cont [8/16] 0.0, 128
        %1307 = vxpose.xlu0.b32.cont [9/16] 0.0, 128
        %1308 = vxpose.xlu0.b32.cont [10/16] 0.0, 128
        %1309 = vxpose.xlu0.b32.cont [11/16] 0.0, 128
        %1310 = vxpose.xlu0.b32.cont [12/16] 0.0, 128
        %1311 = vxpose.xlu0.b32.cont [13/16] 0.0, 128
        %1312 = vxpose.xlu0.b32.cont [14/16] 0.0, 128
        %1313 = vxpose.xlu0.b32.cont [15/16] 0.0, 128
        %1314 = vxpose.xlu0.b32.end [16/16] 0.0, 128
        %v1315 = vpop.trf.xlu0
        %v1316 = vpop.trf.xlu0
        %v1317 = vpop.trf.xlu0
        %v1318 = vpop.trf.xlu0
        %v1319 = vpop.trf.xlu0
        %v1320 = vpop.trf.xlu0
        %v1321 = vpop.trf.xlu0
        %v1322 = vpop.trf.xlu0
        %v1323 = vpop.trf.xlu0
        %v1324 = vpop.trf.xlu0
        %v1325 = vpop.trf.xlu0
        %v1326 = vpop.trf.xlu0
        %v1327 = vpop.trf.xlu0
        %v1328 = vpop.trf.xlu0
        %v1329 = vpop.trf.xlu0
        %v1330 = vpop.trf.xlu0
        %1331 = vxpose.xlu0.b32.start [1/16] %v1245, 128
        %1332 = vxpose.xlu0.b32.cont [2/16] 0.0, 128
        %1333 = vxpose.xlu0.b32.cont [3/16] 0.0, 128
        %1334 = vxpose.xlu0.b32.cont [4/16] 0.0, 128
        %1335 = vxpose.xlu0.b32.cont [5/16] 0.0, 128
        %1336 = vxpose.xlu0.b32.cont [6/16] 0.0, 128
        %1337 = vxpose.xlu0.b32.cont [7/16] 0.0, 128
        %1338 = vxpose.xlu0.b32.cont [8/16] 0.0, 128
        %1339 = vxpose.xlu0.b32.cont [9/16] 0.0, 128
        %1340 = vxpose.xlu0.b32.cont [10/16] 0.0, 128
        %1341 = vxpose.xlu0.b32.cont [11/16] 0.0, 128
        %1342 = vxpose.xlu0.b32.cont [12/16] 0.0, 128
        %1343 = vxpose.xlu0.b32.cont [13/16] 0.0, 128
        %1344 = vxpose.xlu0.b32.cont [14/16] 0.0, 128
        %1345 = vxpose.xlu0.b32.cont [15/16] 0.0, 128
        %1346 = vxpose.xlu0.b32.end [16/16] 0.0, 128
        %v1347 = vpop.trf.xlu0
        %v1348 = vpop.trf.xlu0
        %v1349 = vpop.trf.xlu0
        %v1350 = vpop.trf.xlu0
        %v1351 = vpop.trf.xlu0
        %v1352 = vpop.trf.xlu0
        %v1353 = vpop.trf.xlu0
        %v1354 = vpop.trf.xlu0
        %v1355 = vpop.trf.xlu0
        %v1356 = vpop.trf.xlu0
        %v1357 = vpop.trf.xlu0
        %v1358 = vpop.trf.xlu0
        %v1359 = vpop.trf.xlu0
        %v1360 = vpop.trf.xlu0
        %v1361 = vpop.trf.xlu0
        %v1362 = vpop.trf.xlu0
        %1363 = vxpose.xlu0.b32.start [1/16] %v1248, 128
        %1364 = vxpose.xlu0.b32.cont [2/16] 0.0, 128
        %1365 = vxpose.xlu0.b32.cont [3/16] 0.0, 128
        %1366 = vxpose.xlu0.b32.cont [4/16] 0.0, 128
        %1367 = vxpose.xlu0.b32.cont [5/16] 0.0, 128
        %1368 = vxpose.xlu0.b32.cont [6/16] 0.0, 128
        %1369 = vxpose.xlu0.b32.cont [7/16] 0.0, 128
        %1370 = vxpose.xlu0.b32.cont [8/16] 0.0, 128
        %1371 = vxpose.xlu0.b32.cont [9/16] 0.0, 128
        %1372 = vxpose.xlu0.b32.cont [10/16] 0.0, 128
        %1373 = vxpose.xlu0.b32.cont [11/16] 0.0, 128
        %1374 = vxpose.xlu0.b32.cont [12/16] 0.0, 128
        %1375 = vxpose.xlu0.b32.cont [13/16] 0.0, 128
        %1376 = vxpose.xlu0.b32.cont [14/16] 0.0, 128
        %1377 = vxpose.xlu0.b32.cont [15/16] 0.0, 128
        %1378 = vxpose.xlu0.b32.end [16/16] 0.0, 128
        %v1379 = vpop.trf.xlu0
        %v1380 = vpop.trf.xlu0
        %v1381 = vpop.trf.xlu0
        %v1382 = vpop.trf.xlu0
        %v1383 = vpop.trf.xlu0
        %v1384 = vpop.trf.xlu0
        %v1385 = vpop.trf.xlu0
        %v1386 = vpop.trf.xlu0
        %v1387 = vpop.trf.xlu0
        %v1388 = vpop.trf.xlu0
        %v1389 = vpop.trf.xlu0
        %v1390 = vpop.trf.xlu0
        %v1391 = vpop.trf.xlu0
        %v1392 = vpop.trf.xlu0
        %v1393 = vpop.trf.xlu0
        %v1394 = vpop.trf.xlu0
        %1395 = vxpose.xlu0.b32.start [1/16] %v1253, 128
        %1396 = vxpose.xlu0.b32.cont [2/16] 0.0, 128
        %1397 = vxpose.xlu0.b32.cont [3/16] 0.0, 128
        %1398 = vxpose.xlu0.b32.cont [4/16] 0.0, 128
        %1399 = vxpose.xlu0.b32.cont [5/16] 0.0, 128
        %1400 = vxpose.xlu0.b32.cont [6/16] 0.0, 128
        %1401 = vxpose.xlu0.b32.cont [7/16] 0.0, 128
        %1402 = vxpose.xlu0.b32.cont [8/16] 0.0, 128
        %1403 = vxpose.xlu0.b32.cont [9/16] 0.0, 128
        %1404 = vxpose.xlu0.b32.cont [10/16] 0.0, 128
        %1405 = vxpose.xlu0.b32.cont [11/16] 0.0, 128
        %1406 = vxpose.xlu0.b32.cont [12/16] 0.0, 128
        %1407 = vxpose.xlu0.b32.cont [13/16] 0.0, 128
        %1408 = vxpose.xlu0.b32.cont [14/16] 0.0, 128
        %1409 = vxpose.xlu0.b32.cont [15/16] 0.0, 128
        %1410 = vxpose.xlu0.b32.end [16/16] 0.0, 128
        %v1411 = vpop.trf.xlu0
        %v1412 = vpop.trf.xlu0
        %v1413 = vpop.trf.xlu0
        %v1414 = vpop.trf.xlu0
        %v1415 = vpop.trf.xlu0
        %v1416 = vpop.trf.xlu0
        %v1417 = vpop.trf.xlu0
        %v1418 = vpop.trf.xlu0
        %v1419 = vpop.trf.xlu0
        %v1420 = vpop.trf.xlu0
        %v1421 = vpop.trf.xlu0
        %v1422 = vpop.trf.xlu0
        %v1423 = vpop.trf.xlu0
        %v1424 = vpop.trf.xlu0
        %v1425 = vpop.trf.xlu0
        %v1426 = vpop.trf.xlu0
        %1427 = vxpose.xlu0.b32.start [1/16] %v1256, 128
        %1428 = vxpose.xlu0.b32.cont [2/16] 0.0, 128
        %1429 = vxpose.xlu0.b32.cont [3/16] 0.0, 128
        %1430 = vxpose.xlu0.b32.cont [4/16] 0.0, 128
        %1431 = vxpose.xlu0.b32.cont [5/16] 0.0, 128
        %1432 = vxpose.xlu0.b32.cont [6/16] 0.0, 128
        %1433 = vxpose.xlu0.b32.cont [7/16] 0.0, 128
        %1434 = vxpose.xlu0.b32.cont [8/16] 0.0, 128
        %1435 = vxpose.xlu0.b32.cont [9/16] 0.0, 128
        %1436 = vxpose.xlu0.b32.cont [10/16] 0.0, 128
        %1437 = vxpose.xlu0.b32.cont [11/16] 0.0, 128
        %1438 = vxpose.xlu0.b32.cont [12/16] 0.0, 128
        %1439 = vxpose.xlu0.b32.cont [13/16] 0.0, 128
        %1440 = vxpose.xlu0.b32.cont [14/16] 0.0, 128
        %1441 = vxpose.xlu0.b32.cont [15/16] 0.0, 128
        %1442 = vxpose.xlu0.b32.end [16/16] 0.0, 128
        %v1443 = vpop.trf.xlu0
        %v1444 = vpop.trf.xlu0
        %v1445 = vpop.trf.xlu0
        %v1446 = vpop.trf.xlu0
        %v1447 = vpop.trf.xlu0
        %v1448 = vpop.trf.xlu0
        %v1449 = vpop.trf.xlu0
        %v1450 = vpop.trf.xlu0
        %v1451 = vpop.trf.xlu0
        %v1452 = vpop.trf.xlu0
        %v1453 = vpop.trf.xlu0
        %v1454 = vpop.trf.xlu0
        %v1455 = vpop.trf.xlu0
        %v1456 = vpop.trf.xlu0
        %v1457 = vpop.trf.xlu0
        %v1458 = vpop.trf.xlu0
        %1459 = vxpose.xlu0.b32.start [1/16] %v1261, 128
        %1460 = vxpose.xlu0.b32.cont [2/16] 0.0, 128
        %1461 = vxpose.xlu0.b32.cont [3/16] 0.0, 128
        %1462 = vxpose.xlu0.b32.cont [4/16] 0.0, 128
        %1463 = vxpose.xlu0.b32.cont [5/16] 0.0, 128
        %1464 = vxpose.xlu0.b32.cont [6/16] 0.0, 128
        %1465 = vxpose.xlu0.b32.cont [7/16] 0.0, 128
        %1466 = vxpose.xlu0.b32.cont [8/16] 0.0, 128
        %1467 = vxpose.xlu0.b32.cont [9/16] 0.0, 128
        %1468 = vxpose.xlu0.b32.cont [10/16] 0.0, 128
        %1469 = vxpose.xlu0.b32.cont [11/16] 0.0, 128
        %1470 = vxpose.xlu0.b32.cont [12/16] 0.0, 128
        %1471 = vxpose.xlu0.b32.cont [13/16] 0.0, 128
        %1472 = vxpose.xlu0.b32.cont [14/16] 0.0, 128
        %1473 = vxpose.xlu0.b32.cont [15/16] 0.0, 128
        %1474 = vxpose.xlu0.b32.end [16/16] 0.0, 128
        %v1475 = vpop.trf.xlu0
        %v1476 = vpop.trf.xlu0
        %v1477 = vpop.trf.xlu0
        %v1478 = vpop.trf.xlu0
        %v1479 = vpop.trf.xlu0
        %v1480 = vpop.trf.xlu0
        %v1481 = vpop.trf.xlu0
        %v1482 = vpop.trf.xlu0
        %v1483 = vpop.trf.xlu0
        %v1484 = vpop.trf.xlu0
        %v1485 = vpop.trf.xlu0
        %v1486 = vpop.trf.xlu0
        %v1487 = vpop.trf.xlu0
        %v1488 = vpop.trf.xlu0
        %v1489 = vpop.trf.xlu0
        %v1490 = vpop.trf.xlu0
        %1491 = vxpose.xlu0.b32.start [1/16] %v1264, 128
        %1492 = vxpose.xlu0.b32.cont [2/16] 0.0, 128
        %1493 = vxpose.xlu0.b32.cont [3/16] 0.0, 128
        %1494 = vxpose.xlu0.b32.cont [4/16] 0.0, 128
        %1495 = vxpose.xlu0.b32.cont [5/16] 0.0, 128
        %1496 = vxpose.xlu0.b32.cont [6/16] 0.0, 128
        %1497 = vxpose.xlu0.b32.cont [7/16] 0.0, 128
        %1498 = vxpose.xlu0.b32.cont [8/16] 0.0, 128
        %1499 = vxpose.xlu0.b32.cont [9/16] 0.0, 128
        %1500 = vxpose.xlu0.b32.cont [10/16] 0.0, 128
        %1501 = vxpose.xlu0.b32.cont [11/16] 0.0, 128
        %1502 = vxpose.xlu0.b32.cont [12/16] 0.0, 128
        %1503 = vxpose.xlu0.b32.cont [13/16] 0.0, 128
        %1504 = vxpose.xlu0.b32.cont [14/16] 0.0, 128
        %1505 = vxpose.xlu0.b32.cont [15/16] 0.0, 128
        %1506 = vxpose.xlu0.b32.end [16/16] 0.0, 128
        %v1507 = vpop.trf.xlu0
        %v1508 = vpop.trf.xlu0
        %v1509 = vpop.trf.xlu0
        %v1510 = vpop.trf.xlu0
        %v1511 = vpop.trf.xlu0
        %v1512 = vpop.trf.xlu0
        %v1513 = vpop.trf.xlu0
        %v1514 = vpop.trf.xlu0
        %v1515 = vpop.trf.xlu0
        %v1516 = vpop.trf.xlu0
        %v1517 = vpop.trf.xlu0
        %v1518 = vpop.trf.xlu0
        %v1519 = vpop.trf.xlu0
        %v1520 = vpop.trf.xlu0
        %v1521 = vpop.trf.xlu0
        %v1522 = vpop.trf.xlu0
        %v1523 = vmul.f32 %v1283, 0.35355338
        %v1524 = vmul.f32 %v1315, 0.35355338
        %v1525 = vmul.f32 %v1347, 0.35355338
        %v1526 = vmul.f32 %v1379, 0.35355338
        %v1527 = vmul.f32 %v1411, 0.35355338
        %v1528 = vmul.f32 %v1443, 0.35355338
        %v1529 = vmul.f32 %v1475, 0.35355338
        %v1530 = vmul.f32 %v1507, 0.35355338
        %v1531 = vld [vmem:[%s794] sm:$0xff]
        %v1532 = vlaneseq
        %v1533 = vshrl.u32 %v1532, 7
        %v1534 = vsub.s32 0, %v1533
        %v1535 = vrot.slane %v1531, %v1534
        %1537 = vbcast.lane.b32.xlu0 %v1535, 256
        %v1538 = vpop.permute.xlu0 %1537
        %v1539 = vlaneseq
        %v1540 = vshrl.u32 %v1539, 7
        %v1541 = vsub.s32 1, %v1540
        %v1542 = vrot.slane %v1531, %v1541
        %1544 = vbcast.lane.b32.xlu0 %v1542, 256
        %v1545 = vpop.permute.xlu0 %1544
        %v1546 = vlaneseq
        %v1547 = vshrl.u32 %v1546, 7
        %v1548 = vsub.s32 2, %v1547
        %v1549 = vrot.slane %v1531, %v1548
        %1551 = vbcast.lane.b32.xlu0 %v1549, 256
        %v1552 = vpop.permute.xlu0 %1551
        %v1553 = vlaneseq
        %v1554 = vshrl.u32 %v1553, 7
        %v1555 = vsub.s32 3, %v1554
        %v1556 = vrot.slane %v1531, %v1555
        %1558 = vbcast.lane.b32.xlu0 %v1556, 256
        %v1559 = vpop.permute.xlu0 %1558
        %v1560 = vlaneseq
        %v1561 = vshrl.u32 %v1560, 7
        %v1562 = vsub.s32 4, %v1561
        %v1563 = vrot.slane %v1531, %v1562
        %1565 = vbcast.lane.b32.xlu0 %v1563, 256
        %v1566 = vpop.permute.xlu0 %1565
        %v1567 = vlaneseq
        %v1568 = vshrl.u32 %v1567, 7
        %v1569 = vsub.s32 5, %v1568
        %v1570 = vrot.slane %v1531, %v1569
        %1572 = vbcast.lane.b32.xlu0 %v1570, 256
        %v1573 = vpop.permute.xlu0 %1572
        %v1574 = vlaneseq
        %v1575 = vshrl.u32 %v1574, 7
        %v1576 = vsub.s32 6, %v1575
        %v1577 = vrot.slane %v1531, %v1576
        %1579 = vbcast.lane.b32.xlu0 %v1577, 256
        %v1580 = vpop.permute.xlu0 %1579
        %v1581 = vlaneseq
        %v1582 = vshrl.u32 %v1581, 7
        %v1583 = vsub.s32 7, %v1582
        %v1584 = vrot.slane %v1531, %v1583
        %1586 = vbcast.lane.b32.xlu0 %v1584, 256
        %v1587 = vpop.permute.xlu0 %1586
        %v1588 = vld [vmem:[%s694] sm:$0xf]
        %v1589 = vmul.f32 %v1538, %v1588
        %v1590 = vmul.f32 %v1545, %v1588
        %v1591 = vmul.f32 %v1552, %v1588
        %v1592 = vmul.f32 %v1559, %v1588
        %v1593 = vmul.f32 %v1566, %v1588
        %v1594 = vmul.f32 %v1573, %v1588
        %v1595 = vmul.f32 %v1580, %v1588
        %v1596 = vmul.f32 %v1587, %v1588
        %vm1597 = vcmp.ne.f32.partialorder %v1589, 0.0
        %vm1598 = vcmp.ne.f32.partialorder %v1590, 0.0
        %vm1599 = vcmp.ne.f32.partialorder %v1591, 0.0
        %vm1600 = vcmp.ne.f32.partialorder %v1592, 0.0
        %vm1601 = vcmp.ne.f32.partialorder %v1593, 0.0
        %vm1602 = vcmp.ne.f32.partialorder %v1594, 0.0
        %vm1603 = vcmp.ne.f32.partialorder %v1595, 0.0
        %vm1604 = vcmp.ne.f32.partialorder %v1596, 0.0
        %v1605 = vsel %vm1597, -4.2949673e+09, %v1523
        %v1606 = vsel %vm1598, -4.2949673e+09, %v1524
        %v1607 = vsel %vm1599, -4.2949673e+09, %v1525
        %v1608 = vsel %vm1600, -4.2949673e+09, %v1526
        %v1609 = vsel %vm1601, -4.2949673e+09, %v1527
        %v1610 = vsel %vm1602, -4.2949673e+09, %v1528
        %v1611 = vsel %vm1603, -4.2949673e+09, %v1529
        %v1612 = vsel %vm1604, -4.2949673e+09, %v1530
        %vm1613 = vcmask 60416
        %v1614 = vsel %vm1613, %v1605, -inf
        %1615 = vmax.xlane.f32.xlu0 %v1614
        %v1616 = vpop.xlane.xlu0 %1615
        %v1617 = vsel %vm1613, %v1606, -inf
        %1618 = vmax.xlane.f32.xlu0 %v1617
        %v1619 = vpop.xlane.xlu0 %1618
        %v1620 = vsel %vm1613, %v1607, -inf
        %1621 = vmax.xlane.f32.xlu0 %v1620
        %v1622 = vpop.xlane.xlu0 %1621
        %v1623 = vsel %vm1613, %v1608, -inf
        %1624 = vmax.xlane.f32.xlu0 %v1623
        %v1625 = vpop.xlane.xlu0 %1624
        %v1626 = vsel %vm1613, %v1609, -inf
        %1627 = vmax.xlane.f32.xlu0 %v1626
        %v1628 = vpop.xlane.xlu0 %1627
        %v1629 = vsel %vm1613, %v1610, -inf
        %1630 = vmax.xlane.f32.xlu0 %v1629
        %v1631 = vpop.xlane.xlu0 %1630
        %v1632 = vsel %vm1613, %v1611, -inf
        %1633 = vmax.xlane.f32.xlu0 %v1632
        %v1634 = vpop.xlane.xlu0 %1633
        %v1635 = vsel %vm1613, %v1612, -inf
        %1636 = vmax.xlane.f32.xlu0 %v1635
        %v1637 = vpop.xlane.xlu0 %1636
        %v1638 = vsub.f32 %v1605, %v1616
        %v1639 = vsub.f32 %v1606, %v1619
        %v1640 = vsub.f32 %v1607, %v1622
        %v1641 = vsub.f32 %v1608, %v1625
        %v1642 = vsub.f32 %v1609, %v1628
        %v1643 = vsub.f32 %v1610, %v1631
        %v1644 = vsub.f32 %v1611, %v1634
        %v1645 = vsub.f32 %v1612, %v1637
        %v1646 = vmul.f32 %v1638, 1.442695
        %v1647 = vpow.pop %v1646
        %v1648 = vmul.f32 %v1639, 1.442695
        %v1649 = vpow.pop %v1648
        %v1650 = vmul.f32 %v1640, 1.442695
        %v1651 = vpow.pop %v1650
        %v1652 = vmul.f32 %v1641, 1.442695
        %v1653 = vpow.pop %v1652
        %v1654 = vmul.f32 %v1642, 1.442695
        %v1655 = vpow.pop %v1654
        %v1656 = vmul.f32 %v1643, 1.442695
        %v1657 = vpow.pop %v1656
        %v1658 = vmul.f32 %v1644, 1.442695
        %v1659 = vpow.pop %v1658
        %v1660 = vmul.f32 %v1645, 1.442695
        %v1661 = vpow.pop %v1660
        %v1662 = vsel %vm1613, %v1647, 0.0
        %1663 = vadd.xlane.f32.xlu0 %v1662
        %v1664 = vpop.xlane.xlu0 %1663
        %v1665 = vsel %vm1613, %v1649, 0.0
        %1666 = vadd.xlane.f32.xlu0 %v1665
        %v1667 = vpop.xlane.xlu0 %1666
        %v1668 = vsel %vm1613, %v1651, 0.0
        %1669 = vadd.xlane.f32.xlu0 %v1668
        %v1670 = vpop.xlane.xlu0 %1669
        %v1671 = vsel %vm1613, %v1653, 0.0
        %1672 = vadd.xlane.f32.xlu0 %v1671
        %v1673 = vpop.xlane.xlu0 %1672
        %v1674 = vsel %vm1613, %v1655, 0.0
        %1675 = vadd.xlane.f32.xlu0 %v1674
        %v1676 = vpop.xlane.xlu0 %1675
        %v1677 = vsel %vm1613, %v1657, 0.0
        %1678 = vadd.xlane.f32.xlu0 %v1677
        %v1679 = vpop.xlane.xlu0 %1678
        %v1680 = vsel %vm1613, %v1659, 0.0
        %1681 = vadd.xlane.f32.xlu0 %v1680
        %v1682 = vpop.xlane.xlu0 %1681
        %v1683 = vsel %vm1613, %v1661, 0.0
        %1684 = vadd.xlane.f32.xlu0 %v1683
        %v1685 = vpop.xlane.xlu0 %1684
        %v1686 = vrcp.pop %v1664
        %v1687 = vrcp.pop %v1667
        %v1688 = vrcp.pop %v1670
        %v1689 = vrcp.pop %v1673
        %v1690 = vrcp.pop %v1676
        %v1691 = vrcp.pop %v1679
        %v1692 = vrcp.pop %v1682
        %v1693 = vrcp.pop %v1685
        %v1694 = vmul.f32 %v1647, %v1686
        %v1695 = vmul.f32 %v1649, %v1687
        %v1696 = vmul.f32 %v1651, %v1688
        %v1697 = vmul.f32 %v1653, %v1689
        %v1698 = vmul.f32 %v1655, %v1690
        %v1699 = vmul.f32 %v1657, %v1691
        %v1700 = vmul.f32 %v1659, %v1692
        %v1701 = vmul.f32 %v1661, %v1693
        %1702 = vxpose.xlu0.b32.start [1/16] %v1694, 128
        %1703 = vxpose.xlu0.b32.cont [2/16] 0.0, 128
        %1704 = vxpose.xlu0.b32.cont [3/16] 0.0, 128
        %1705 = vxpose.xlu0.b32.cont [4/16] 0.0, 128
        %1706 = vxpose.xlu0.b32.cont [5/16] 0.0, 128
        %1707 = vxpose.xlu0.b32.cont [6/16] 0.0, 128
        %1708 = vxpose.xlu0.b32.cont [7/16] 0.0, 128
        %1709 = vxpose.xlu0.b32.cont [8/16] 0.0, 128
        %1710 = vxpose.xlu0.b32.cont [9/16] 0.0, 128
        %1711 = vxpose.xlu0.b32.cont [10/16] 0.0, 128
        %1712 = vxpose.xlu0.b32.cont [11/16] 0.0, 128
        %1713 = vxpose.xlu0.b32.cont [12/16] 0.0, 128
        %1714 = vxpose.xlu0.b32.cont [13/16] 0.0, 128
        %1715 = vxpose.xlu0.b32.cont [14/16] 0.0, 128
        %1716 = vxpose.xlu0.b32.cont [15/16] 0.0, 128
        %1717 = vxpose.xlu0.b32.end [16/16] 0.0, 128
        %v1718 = vpop.trf.xlu0
        %v1719 = vpop.trf.xlu0
        %v1720 = vpop.trf.xlu0
        %v1721 = vpop.trf.xlu0
        %v1722 = vpop.trf.xlu0
        %v1723 = vpop.trf.xlu0
        %v1724 = vpop.trf.xlu0
        %v1725 = vpop.trf.xlu0
        %v1726 = vpop.trf.xlu0
        %v1727 = vpop.trf.xlu0
        %v1728 = vpop.trf.xlu0
        %v1729 = vpop.trf.xlu0
        %v1730 = vpop.trf.xlu0
        %v1731 = vpop.trf.xlu0
        %v1732 = vpop.trf.xlu0
        %v1733 = vpop.trf.xlu0
        %1734 = vxpose.xlu0.b32.start [1/16] %v1695, 128
        %1735 = vxpose.xlu0.b32.cont [2/16] 0.0, 128
        %1736 = vxpose.xlu0.b32.cont [3/16] 0.0, 128
        %1737 = vxpose.xlu0.b32.cont [4/16] 0.0, 128
        %1738 = vxpose.xlu0.b32.cont [5/16] 0.0, 128
        %1739 = vxpose.xlu0.b32.cont [6/16] 0.0, 128
        %1740 = vxpose.xlu0.b32.cont [7/16] 0.0, 128
        %1741 = vxpose.xlu0.b32.cont [8/16] 0.0, 128
        %1742 = vxpose.xlu0.b32.cont [9/16] 0.0, 128
        %1743 = vxpose.xlu0.b32.cont [10/16] 0.0, 128
        %1744 = vxpose.xlu0.b32.cont [11/16] 0.0, 128
        %1745 = vxpose.xlu0.b32.cont [12/16] 0.0, 128
        %1746 = vxpose.xlu0.b32.cont [13/16] 0.0, 128
        %1747 = vxpose.xlu0.b32.cont [14/16] 0.0, 128
        %1748 = vxpose.xlu0.b32.cont [15/16] 0.0, 128
        %1749 = vxpose.xlu0.b32.end [16/16] 0.0, 128
        %v1750 = vpop.trf.xlu0
        %v1751 = vpop.trf.xlu0
        %v1752 = vpop.trf.xlu0
        %v1753 = vpop.trf.xlu0
        %v1754 = vpop.trf.xlu0
        %v1755 = vpop.trf.xlu0
        %v1756 = vpop.trf.xlu0
        %v1757 = vpop.trf.xlu0
        %v1758 = vpop.trf.xlu0
        %v1759 = vpop.trf.xlu0
        %v1760 = vpop.trf.xlu0
        %v1761 = vpop.trf.xlu0
        %v1762 = vpop.trf.xlu0
        %v1763 = vpop.trf.xlu0
        %v1764 = vpop.trf.xlu0
        %v1765 = vpop.trf.xlu0
        %1766 = vxpose.xlu0.b32.start [1/16] %v1696, 128
        %1767 = vxpose.xlu0.b32.cont [2/16] 0.0, 128
        %1768 = vxpose.xlu0.b32.cont [3/16] 0.0, 128
        %1769 = vxpose.xlu0.b32.cont [4/16] 0.0, 128
        %1770 = vxpose.xlu0.b32.cont [5/16] 0.0, 128
        %1771 = vxpose.xlu0.b32.cont [6/16] 0.0, 128
        %1772 = vxpose.xlu0.b32.cont [7/16] 0.0, 128
        %1773 = vxpose.xlu0.b32.cont [8/16] 0.0, 128
        %1774 = vxpose.xlu0.b32.cont [9/16] 0.0, 128
        %1775 = vxpose.xlu0.b32.cont [10/16] 0.0, 128
        %1776 = vxpose.xlu0.b32.cont [11/16] 0.0, 128
        %1777 = vxpose.xlu0.b32.cont [12/16] 0.0, 128
        %1778 = vxpose.xlu0.b32.cont [13/16] 0.0, 128
        %1779 = vxpose.xlu0.b32.cont [14/16] 0.0, 128
        %1780 = vxpose.xlu0.b32.cont [15/16] 0.0, 128
        %1781 = vxpose.xlu0.b32.end [16/16] 0.0, 128
        %v1782 = vpop.trf.xlu0
        %v1783 = vpop.trf.xlu0
        %v1784 = vpop.trf.xlu0
        %v1785 = vpop.trf.xlu0
        %v1786 = vpop.trf.xlu0
        %v1787 = vpop.trf.xlu0
        %v1788 = vpop.trf.xlu0
        %v1789 = vpop.trf.xlu0
        %v1790 = vpop.trf.xlu0
        %v1791 = vpop.trf.xlu0
        %v1792 = vpop.trf.xlu0
        %v1793 = vpop.trf.xlu0
        %v1794 = vpop.trf.xlu0
        %v1795 = vpop.trf.xlu0
        %v1796 = vpop.trf.xlu0
        %v1797 = vpop.trf.xlu0
        %1798 = vxpose.xlu0.b32.start [1/16] %v1697, 128
        %1799 = vxpose.xlu0.b32.cont [2/16] 0.0, 128
        %1800 = vxpose.xlu0.b32.cont [3/16] 0.0, 128
        %1801 = vxpose.xlu0.b32.cont [4/16] 0.0, 128
        %1802 = vxpose.xlu0.b32.cont [5/16] 0.0, 128
        %1803 = vxpose.xlu0.b32.cont [6/16] 0.0, 128
        %1804 = vxpose.xlu0.b32.cont [7/16] 0.0, 128
        %1805 = vxpose.xlu0.b32.cont [8/16] 0.0, 128
        %1806 = vxpose.xlu0.b32.cont [9/16] 0.0, 128
        %1807 = vxpose.xlu0.b32.cont [10/16] 0.0, 128
        %1808 = vxpose.xlu0.b32.cont [11/16] 0.0, 128
        %1809 = vxpose.xlu0.b32.cont [12/16] 0.0, 128
        %1810 = vxpose.xlu0.b32.cont [13/16] 0.0, 128
        %1811 = vxpose.xlu0.b32.cont [14/16] 0.0, 128
        %1812 = vxpose.xlu0.b32.cont [15/16] 0.0, 128
        %1813 = vxpose.xlu0.b32.end [16/16] 0.0, 128
        %v1814 = vpop.trf.xlu0
        %v1815 = vpop.trf.xlu0
        %v1816 = vpop.trf.xlu0
        %v1817 = vpop.trf.xlu0
        %v1818 = vpop.trf.xlu0
        %v1819 = vpop.trf.xlu0
        %v1820 = vpop.trf.xlu0
        %v1821 = vpop.trf.xlu0
        %v1822 = vpop.trf.xlu0
        %v1823 = vpop.trf.xlu0
        %v1824 = vpop.trf.xlu0
        %v1825 = vpop.trf.xlu0
        %v1826 = vpop.trf.xlu0
        %v1827 = vpop.trf.xlu0
        %v1828 = vpop.trf.xlu0
        %v1829 = vpop.trf.xlu0
        %1830 = vxpose.xlu0.b32.start [1/16] %v1698, 128
        %1831 = vxpose.xlu0.b32.cont [2/16] 0.0, 128
        %1832 = vxpose.xlu0.b32.cont [3/16] 0.0, 128
        %1833 = vxpose.xlu0.b32.cont [4/16] 0.0, 128
        %1834 = vxpose.xlu0.b32.cont [5/16] 0.0, 128
        %1835 = vxpose.xlu0.b32.cont [6/16] 0.0, 128
        %1836 = vxpose.xlu0.b32.cont [7/16] 0.0, 128
        %1837 = vxpose.xlu0.b32.cont [8/16] 0.0, 128
        %1838 = vxpose.xlu0.b32.cont [9/16] 0.0, 128
        %1839 = vxpose.xlu0.b32.cont [10/16] 0.0, 128
        %1840 = vxpose.xlu0.b32.cont [11/16] 0.0, 128
        %1841 = vxpose.xlu0.b32.cont [12/16] 0.0, 128
        %1842 = vxpose.xlu0.b32.cont [13/16] 0.0, 128
        %1843 = vxpose.xlu0.b32.cont [14/16] 0.0, 128
        %1844 = vxpose.xlu0.b32.cont [15/16] 0.0, 128
        %1845 = vxpose.xlu0.b32.end [16/16] 0.0, 128
        %v1846 = vpop.trf.xlu0
        %v1847 = vpop.trf.xlu0
        %v1848 = vpop.trf.xlu0
        %v1849 = vpop.trf.xlu0
        %v1850 = vpop.trf.xlu0
        %v1851 = vpop.trf.xlu0
        %v1852 = vpop.trf.xlu0
        %v1853 = vpop.trf.xlu0
        %v1854 = vpop.trf.xlu0
        %v1855 = vpop.trf.xlu0
        %v1856 = vpop.trf.xlu0
        %v1857 = vpop.trf.xlu0
        %v1858 = vpop.trf.xlu0
        %v1859 = vpop.trf.xlu0
        %v1860 = vpop.trf.xlu0
        %v1861 = vpop.trf.xlu0
        %1862 = vxpose.xlu0.b32.start [1/16] %v1699, 128
        %1863 = vxpose.xlu0.b32.cont [2/16] 0.0, 128
        %1864 = vxpose.xlu0.b32.cont [3/16] 0.0, 128
        %1865 = vxpose.xlu0.b32.cont [4/16] 0.0, 128
        %1866 = vxpose.xlu0.b32.cont [5/16] 0.0, 128
        %1867 = vxpose.xlu0.b32.cont [6/16] 0.0, 128
        %1868 = vxpose.xlu0.b32.cont [7/16] 0.0, 128
        %1869 = vxpose.xlu0.b32.cont [8/16] 0.0, 128
        %1870 = vxpose.xlu0.b32.cont [9/16] 0.0, 128
        %1871 = vxpose.xlu0.b32.cont [10/16] 0.0, 128
        %1872 = vxpose.xlu0.b32.cont [11/16] 0.0, 128
        %1873 = vxpose.xlu0.b32.cont [12/16] 0.0, 128
        %1874 = vxpose.xlu0.b32.cont [13/16] 0.0, 128
        %1875 = vxpose.xlu0.b32.cont [14/16] 0.0, 128
        %1876 = vxpose.xlu0.b32.cont [15/16] 0.0, 128
        %1877 = vxpose.xlu0.b32.end [16/16] 0.0, 128
        %v1878 = vpop.trf.xlu0
        %v1879 = vpop.trf.xlu0
        %v1880 = vpop.trf.xlu0
        %v1881 = vpop.trf.xlu0
        %v1882 = vpop.trf.xlu0
        %v1883 = vpop.trf.xlu0
        %v1884 = vpop.trf.xlu0
        %v1885 = vpop.trf.xlu0
        %v1886 = vpop.trf.xlu0
        %v1887 = vpop.trf.xlu0
        %v1888 = vpop.trf.xlu0
        %v1889 = vpop.trf.xlu0
        %v1890 = vpop.trf.xlu0
        %v1891 = vpop.trf.xlu0
        %v1892 = vpop.trf.xlu0
        %v1893 = vpop.trf.xlu0
        %1894 = vxpose.xlu0.b32.start [1/16] %v1700, 128
        %1895 = vxpose.xlu0.b32.cont [2/16] 0.0, 128
        %1896 = vxpose.xlu0.b32.cont [3/16] 0.0, 128
        %1897 = vxpose.xlu0.b32.cont [4/16] 0.0, 128
        %1898 = vxpose.xlu0.b32.cont [5/16] 0.0, 128
        %1899 = vxpose.xlu0.b32.cont [6/16] 0.0, 128
        %1900 = vxpose.xlu0.b32.cont [7/16] 0.0, 128
        %1901 = vxpose.xlu0.b32.cont [8/16] 0.0, 128
        %1902 = vxpose.xlu0.b32.cont [9/16] 0.0, 128
        %1903 = vxpose.xlu0.b32.cont [10/16] 0.0, 128
        %1904 = vxpose.xlu0.b32.cont [11/16] 0.0, 128
        %1905 = vxpose.xlu0.b32.cont [12/16] 0.0, 128
        %1906 = vxpose.xlu0.b32.cont [13/16] 0.0, 128
        %1907 = vxpose.xlu0.b32.cont [14/16] 0.0, 128
        %1908 = vxpose.xlu0.b32.cont [15/16] 0.0, 128
        %1909 = vxpose.xlu0.b32.end [16/16] 0.0, 128
        %v1910 = vpop.trf.xlu0
        %v1911 = vpop.trf.xlu0
        %v1912 = vpop.trf.xlu0
        %v1913 = vpop.trf.xlu0
        %v1914 = vpop.trf.xlu0
        %v1915 = vpop.trf.xlu0
        %v1916 = vpop.trf.xlu0
        %v1917 = vpop.trf.xlu0
        %v1918 = vpop.trf.xlu0
        %v1919 = vpop.trf.xlu0
        %v1920 = vpop.trf.xlu0
        %v1921 = vpop.trf.xlu0
        %v1922 = vpop.trf.xlu0
        %v1923 = vpop.trf.xlu0
        %v1924 = vpop.trf.xlu0
        %v1925 = vpop.trf.xlu0
        %1926 = vxpose.xlu0.b32.start [1/16] %v1701, 128
        %1927 = vxpose.xlu0.b32.cont [2/16] 0.0, 128
        %1928 = vxpose.xlu0.b32.cont [3/16] 0.0, 128
        %1929 = vxpose.xlu0.b32.cont [4/16] 0.0, 128
        %1930 = vxpose.xlu0.b32.cont [5/16] 0.0, 128
        %1931 = vxpose.xlu0.b32.cont [6/16] 0.0, 128
        %1932 = vxpose.xlu0.b32.cont [7/16] 0.0, 128
        %1933 = vxpose.xlu0.b32.cont [8/16] 0.0, 128
        %1934 = vxpose.xlu0.b32.cont [9/16] 0.0, 128
        %1935 = vxpose.xlu0.b32.cont [10/16] 0.0, 128
        %1936 = vxpose.xlu0.b32.cont [11/16] 0.0, 128
        %1937 = vxpose.xlu0.b32.cont [12/16] 0.0, 128
        %1938 = vxpose.xlu0.b32.cont [13/16] 0.0, 128
        %1939 = vxpose.xlu0.b32.cont [14/16] 0.0, 128
        %1940 = vxpose.xlu0.b32.cont [15/16] 0.0, 128
        %1941 = vxpose.xlu0.b32.end [16/16] 0.0, 128
        %v1942 = vpop.trf.xlu0
        %v1943 = vpop.trf.xlu0
        %v1944 = vpop.trf.xlu0
        %v1945 = vpop.trf.xlu0
        %v1946 = vpop.trf.xlu0
        %v1947 = vpop.trf.xlu0
        %v1948 = vpop.trf.xlu0
        %v1949 = vpop.trf.xlu0
        %v1950 = vpop.trf.xlu0
        %v1951 = vpop.trf.xlu0
        %v1952 = vpop.trf.xlu0
        %v1953 = vpop.trf.xlu0
        %v1954 = vpop.trf.xlu0
        %v1955 = vpop.trf.xlu0
        %v1956 = vpop.trf.xlu0
        %v1957 = vpop.trf.xlu0
        %v1958 = vpack.c.bf16 %v1750, %v1718
        %v1959 = vpack.c.bf16 %v1814, %v1782
        %v1960 = vpack.c.bf16 %v1878, %v1846
        %v1961 = vpack.c.bf16 %v1942, %v1910
        %v1962 = vld [vmem:[%s10] sm:$0x3]
        %vm1963 = vcmask 31744
        %v1965 = vsel %vm1963, %v1958, 0
        %v1968 = vsel %vm1963, %v1959, 0
        %v1971 = vsel %vm1963, %v1960, 0
        %v1974 = vsel %vm1963, %v1961, 0
        %vm1976 = vcmask 1041408
        %v1978 = vsel %vm1976, %v1962, 0
        %1980 = vmatprep.subr.bf16.mxu0 0
        %1981 = vmatpush1.bf16.msra.mxu0 %v1978
        %1982 = vmatprep.subr.bf16.mxu0 0
        %1983 = vmatpush1.bf16.msra.mxu0 0
        %1984 = vmatprep.subr.bf16.mxu0 0
        %1985 = vmatpush1.bf16.msra.mxu0 0
        %1986 = vmatprep.subr.bf16.mxu0 0
        %1987 = vmatpush1.bf16.msra.mxu0 0
        %1988 = vmatprep.subr.bf16.mxu0 0
        %1989 = vmatpush1.bf16.msra.mxu0 0
        %1990 = vmatprep.subr.bf16.mxu0 0
        %1991 = vmatpush1.bf16.msra.mxu0 0
        %1992 = vmatprep.subr.bf16.mxu0 0
        %1993 = vmatpush1.bf16.msra.mxu0 0
        %1994 = vmatprep.subr.bf16.mxu0 0
        %1995 = vmatpush1.bf16.msra.mxu0 0
        %1996 = vmatprep.subr.bf16.mxu0 0
        %1997 = vmatpush1.bf16.msra.mxu0 0
        %1998 = vmatprep.subr.bf16.mxu0 0
        %1999 = vmatpush1.bf16.msra.mxu0 0
        %2000 = vmatprep.subr.bf16.mxu0 0
        %2001 = vmatpush1.bf16.msra.mxu0 0
        %2002 = vmatprep.subr.bf16.mxu0 0
        %2003 = vmatpush1.bf16.msra.mxu0 0
        %2004 = vmatprep.subr.bf16.mxu0 0
        %2005 = vmatpush1.bf16.msra.mxu0 0
        %2006 = vmatprep.subr.bf16.mxu0 0
        %2007 = vmatpush1.bf16.msra.mxu0 0
        %2008 = vmatprep.subr.bf16.mxu0 0
        %2009 = vmatpush1.bf16.msra.mxu0 0
        %2010 = vmatprep.subr.bf16.mxu0 0
        %2011 = vmatpush1.bf16.msra.mxu0 0
        %2012 = vmatprep.mubr.bf16.mxu0 0
        %2013 = vmatmul.mubr.bf16.gmra.mrb[0].mxu0 %v1965
        %v2014 = vpop.f32.mrb[0].mxu0
        %v2015 = vadd.f32 0.0, %v2014
        %v2016 = vpop.f32.mrb[0].mxu0
        %v2017 = vpop.f32.mrb[0].mxu0
        %v2018 = vadd.f32 0.0, %v2017
        %v2019 = vpop.f32.mrb[0].mxu0
        %2020 = vmatprep.mubr.bf16.mxu0 0
        %2021 = vmatmul.mubr.bf16.gmra.mrb[0].mxu0 %v1968
        %v2022 = vpop.f32.mrb[0].mxu0
        %v2023 = vadd.f32 0.0, %v2022
        %v2024 = vpop.f32.mrb[0].mxu0
        %v2025 = vpop.f32.mrb[0].mxu0
        %v2026 = vadd.f32 0.0, %v2025
        %v2027 = vpop.f32.mrb[0].mxu0
        %2028 = vmatprep.mubr.bf16.mxu0 0
        %2029 = vmatmul.mubr.bf16.gmra.mrb[0].mxu0 %v1971
        %v2030 = vpop.f32.mrb[0].mxu0
        %v2031 = vadd.f32 0.0, %v2030
        %v2032 = vpop.f32.mrb[0].mxu0
        %v2033 = vpop.f32.mrb[0].mxu0
        %v2034 = vadd.f32 0.0, %v2033
        %v2035 = vpop.f32.mrb[0].mxu0
        %2036 = vmatprep.mubr.bf16.mxu0 0
        %2037 = vmatmul.mubr.bf16.gmra.mrb[0].mxu0 %v1974
        %v2038 = vpop.f32.mrb[0].mxu0
        %v2039 = vadd.f32 0.0, %v2038
        %v2040 = vpop.f32.mrb[0].mxu0
        %v2041 = vpop.f32.mrb[0].mxu0
        %v2042 = vadd.f32 0.0, %v2041
        %v2043 = vpop.f32.mrb[0].mxu0
        %2044 = vdwg.mxu0
        %v2045 = vpack.c.bf16 %v2018, %v2015
        %v2046 = vpack.c.bf16 %v2026, %v2023
        %v2047 = vpack.c.bf16 %v2034, %v2031
        %v2048 = vpack.c.bf16 %v2042, %v2039
        %v2053 = vunpack.c.l.b16 %v2045
        %v2054 = vunpack.c.h.b16 %v2045
        %v2055 = vunpack.c.l.b16 %v2046
        %v2056 = vunpack.c.h.b16 %v2046
        %v2057 = vunpack.c.l.b16 %v2047
        %v2058 = vunpack.c.h.b16 %v2047
        %v2059 = vunpack.c.l.b16 %v2048
        %v2060 = vunpack.c.h.b16 %v2048
        %v2061 = vpack.c.b16 %v2053, %v2053
        %v2062 = vpack.c.b16 %v2054, %v2054
        %v2063 = vpack.c.b16 %v2055, %v2055
        %v2064 = vpack.c.b16 %v2056, %v2056
        %v2065 = vpack.c.b16 %v2057, %v2057
        %v2066 = vpack.c.b16 %v2058, %v2058
        %v2067 = vpack.c.b16 %v2059, %v2059
        %v2068 = vpack.c.b16 %v2060, %v2060
        %v2077 = vld [vmem:[%s685] sm:$0xf]
        %v2078 = vld [vmem:[%s685 + $0x4] sm:$0xf]
        %v2079 = vld [vmem:[%s685 + $0x8] sm:$0xf]
        %v2080 = vld [vmem:[%s685 + $0xc] sm:$0xf]
        %v2081 = vld [vmem:[%s685 + $0x10] sm:$0xf]
        %v2082 = vld [vmem:[%s685 + $0x14] sm:$0xf]
        %v2083 = vld [vmem:[%s685 + $0x18] sm:$0xf]
        %v2084 = vld [vmem:[%s685 + $0x1c] sm:$0xf]
        %v2085 = vadd.bf16 %v1000, %v2077
        %v2086 = vadd.bf16 %v1000, %v2078
        %v2087 = vadd.bf16 %v1000, %v2079
        %v2088 = vadd.bf16 %v1000, %v2080
        %v2089 = vadd.bf16 %v1000, %v2081
        %v2090 = vadd.bf16 %v1000, %v2082
        %v2091 = vadd.bf16 %v1000, %v2083
        %v2092 = vadd.bf16 %v1000, %v2084
        %v2093 = vmul.bf16 %v2061, %v2085
        %v2094 = vmul.bf16 %v2062, %v2086
        %v2095 = vmul.bf16 %v2063, %v2087
        %v2096 = vmul.bf16 %v2064, %v2088
        %v2097 = vmul.bf16 %v2065, %v2089
        %v2098 = vmul.bf16 %v2066, %v2090
        %v2099 = vmul.bf16 %v2067, %v2091
        %v2100 = vmul.bf16 %v2068, %v2092
        %v2101 = vunpack.c.l.bf16 %v2093
        %v2102 = vunpack.c.l.bf16 %v2094
        %v2103 = vunpack.c.l.bf16 %v2095
        %v2104 = vunpack.c.l.bf16 %v2096
        %v2105 = vunpack.c.l.bf16 %v2097
        %v2106 = vunpack.c.l.bf16 %v2098
        %v2107 = vunpack.c.l.bf16 %v2099
        %v2108 = vunpack.c.l.bf16 %v2100
        %v2109 = vsel %vm820, %v2101, 0.0
        %v2110 = vrot.slane %v2109, 4
        %v2111 = vadd.f32 %v2109, %v2110
        %v2112 = vrot.slane %v2111, 2
        %v2113 = vadd.f32 %v2111, %v2112
        %v2114 = vrot.slane %v2113, 1
        %v2115 = vadd.f32 %v2113, %v2114
        %v2116 = vsel %vm820, %v2102, 0.0
        %v2117 = vrot.slane %v2116, 4
        %v2118 = vadd.f32 %v2116, %v2117
        %v2119 = vrot.slane %v2118, 2
        %v2120 = vadd.f32 %v2118, %v2119
        %v2121 = vrot.slane %v2120, 1
        %v2122 = vadd.f32 %v2120, %v2121
        %v2123 = vsel %vm820, %v2103, 0.0
        %v2124 = vrot.slane %v2123, 4
        %v2125 = vadd.f32 %v2123, %v2124
        %v2126 = vrot.slane %v2125, 2
        %v2127 = vadd.f32 %v2125, %v2126
        %v2128 = vrot.slane %v2127, 1
        %v2129 = vadd.f32 %v2127, %v2128
        %v2130 = vsel %vm820, %v2104, 0.0
        %v2131 = vrot.slane %v2130, 4
        %v2132 = vadd.f32 %v2130, %v2131
        %v2133 = vrot.slane %v2132, 2
        %v2134 = vadd.f32 %v2132, %v2133
        %v2135 = vrot.slane %v2134, 1
        %v2136 = vadd.f32 %v2134, %v2135
        %v2137 = vsel %vm820, %v2105, 0.0
        %v2138 = vrot.slane %v2137, 4
        %v2139 = vadd.f32 %v2137, %v2138
        %v2140 = vrot.slane %v2139, 2
        %v2141 = vadd.f32 %v2139, %v2140
        %v2142 = vrot.slane %v2141, 1
        %v2143 = vadd.f32 %v2141, %v2142
        %v2144 = vsel %vm820, %v2106, 0.0
        %v2145 = vrot.slane %v2144, 4
        %v2146 = vadd.f32 %v2144, %v2145
        %v2147 = vrot.slane %v2146, 2
        %v2148 = vadd.f32 %v2146, %v2147
        %v2149 = vrot.slane %v2148, 1
        %v2150 = vadd.f32 %v2148, %v2149
        %v2151 = vsel %vm820, %v2107, 0.0
        %v2152 = vrot.slane %v2151, 4
        %v2153 = vadd.f32 %v2151, %v2152
        %v2154 = vrot.slane %v2153, 2
        %v2155 = vadd.f32 %v2153, %v2154
        %v2156 = vrot.slane %v2155, 1
        %v2157 = vadd.f32 %v2155, %v2156
        %v2158 = vsel %vm820, %v2108, 0.0
        %v2159 = vrot.slane %v2158, 4
        %v2160 = vadd.f32 %v2158, %v2159
        %v2161 = vrot.slane %v2160, 2
        %v2162 = vadd.f32 %v2160, %v2161
        %v2163 = vrot.slane %v2162, 1
        %v2164 = vadd.f32 %v2162, %v2163
        %vm2173 = vcmask 1041409
        %v2174 = vsel %vm2173, %v2122, %v2115
        %vm2175 = vcmask 1042434
        %v2176 = vsel %vm2175, %v2129, %v2174
        %vm2177 = vcmask 1043459
        %v2178 = vsel %vm2177, %v2136, %v2176
        %vm2179 = vcmask 1044484
        %v2180 = vsel %vm2179, %v2143, %v2178
        %vm2181 = vcmask 1045509
        %v2182 = vsel %vm2181, %v2150, %v2180
        %vm2183 = vcmask 1046534
        %v2184 = vsel %vm2183, %v2157, %v2182
        %vm2185 = vcmask 1047559
        %v2186 = vsel %vm2185, %v2164, %v2184
        %2188 = vst.msk [vmem:[%s776] sm:$0xff] %vm820, %v2186
        %s2189 = sand.u32 %s420, 1
        %s2190 = scalar_lea.sflag [#allocation4], %s2189
        %s2191 = sand.u32 %s420, 1
        %s2192 = smul.addr %s2191, 8
        %s2193 = scalar_lea.vmem [#allocation17], %s2192
        // Predicated region
        $region117: #{tpu_custom_call.1} parent=79 // pred_check
          %p2194 = pneg %p430
        $region118: #{tpu_custom_call.1} parent=79 // pred_check_branch
          %2196 = sbr.rel (%p2194) target = $region120
        $region119: #{tpu_custom_call.1} parent=79 // pred_region
          %s2198 = ssub.s32 128, 128
          %2199 = vsyncadd %s2190, %s2198
          %s2200 = sadd.s32 %s45, %s44
          %s2201 = smul.addr %s2200, 128
          %s2202 = scalar_lea.hbm %s15, %s2201
          %s2204 = sshll.u32 %s2193, 4
          %s2205 = int_to_ptr.vmem [resolvable:$true] %s2204
          %2207 = dma.vmem_to_hbm [thread:$0]  %s2205, 128, %s2202, %s2190
        $region120: #{tpu_custom_call.1} parent=79 // pred_fallthru
          _
      $region80: #{tpu_custom_call.1} parent=5 // pred_fallthru
        _
      %p2208 = scmp.le.s32.totalorder 2, %s35
      // Predicated region
      $region121: #{tpu_custom_call.1} parent=5 // pred_check
        %p2209 = pneg %p2208
      $region122: #{tpu_custom_call.1} parent=5 // pred_check_branch
        %2211 = sbr.rel (%p2209) target = $region124
      $region123: #{tpu_custom_call.1} parent=5 // pred_region
        %s2212 = ssub.s32 %s35, 2
        // Predicated region
        $region125: #{tpu_custom_call.1} parent=123 // pred_check
          %p2213 = pneg %p436
        $region126: #{tpu_custom_call.1} parent=123 // pred_check_branch
          %2215 = sbr.rel (%p2213) target = $region128
        $region127: #{tpu_custom_call.1} parent=123 // pred_region
          %s2216 = sand.u32 %s421, 1
          %s2217 = scalar_lea.sflag [#allocation4], %s2216
          %s2218 = sand.u32 %s421, 1
          %s2219 = smul.addr %s2218, 8
          %s2220 = scalar_lea.vmem [#allocation17], %s2219
          %2221 = dma.done %s2217, 128
        $region128: #{tpu_custom_call.1} parent=123 // pred_fallthru
          _
      $region124: #{tpu_custom_call.1} parent=5 // pred_fallthru
        _
    $region6: #{tpu_custom_call.1} parent=1 // loop_footer
      %s39 = sadd.s32 1, %s35
    $region7: #{tpu_custom_call.1} parent=1 // loop_footer_branch
      %34 = sbr.rel target = $region3
    $region8: #{tpu_custom_call.1} parent=1 // loop_exit
      _
    %2222 = vsyncpa [#allocation3], 1
    %s2223 = scalar_lea.sflag [#allocation3], 1
    %2224 = vsyncpa %s2223, 1
    %2225 = vsyncpa [#allocation6], 1
    %s2226 = scalar_lea.sflag [#allocation6], 1
    %2227 = vsyncpa %s2226, 1
    %2228 = vsyncpa [#allocation9], 1
    %2229 = vsyncpa [#allocation12], 1
    %2230 = vsyncpa [#allocation15], 1
    %s2231 = scalar_lea.sflag [#allocation15], 1
    %2232 = vsyncpa %s2231, 1
    %2233 = vsyncpa [#allocation4], 1
    %s2234 = scalar_lea.sflag [#allocation4], 1
    %2235 = vsyncpa %s2234, 1

</llo_original>
